<compile_context>
chip_gen: v6e
topology: v6e:2x2x1
jax: 0.10.0
libtpu: 0.0.40
codegen_flags: <defaults>
</compile_context>

<pallas_src>
import jax
import jax.numpy as jnp
from jax.experimental import pallas as pl
from jax.experimental.pallas import tpu as pltpu

BN_EPS = 1e-5


def _bn(x, p):
    # Eval-mode BatchNorm1d (reference only). p rows = [gamma, beta, mean, var].
    return p[0:1] * (x - p[2:3]) * jax.lax.rsqrt(p[3:4] + BN_EPS) + p[1:2]


# ---------------------------------------------------------------------------
# Pallas kernel: one grid step == one super-block of graphs (Mblk node rows).
# ---------------------------------------------------------------------------
def ginnet_kernel(h_ref, A_ref, snorm_ref, P_ref, ope_ref,
                  Wemb_ref, bemb_ref,
                  W1_ref, b1_ref, W2_ref, b2_ref, bng_ref,
                  Wp_ref, bp_ref,
                  out_ref, pool_ref):
    f32, bf16 = jnp.float32, jnp.bfloat16
    L = W1_ref.shape[0]                      # static -> python loop unrolled
    Hp = W1_ref.shape[-1]

    A = A_ref[...]                           # (Mblk, Mblk) bf16, block-diagonal
    P = P_ref[...]                           # (Gblk, Mblk) f32, membership+validity
    snorm = snorm_ref[...]                   # (Mblk, 1)    f32

    # embedding_h (true K=in_dim contraction; bf16 MXU, f32 accumulate)
    h = jnp.dot(h_ref[...], Wemb_ref[...], preferred_element_type=f32) + bemb_ref[...]

    # hidden_rep[0]: masked sum-pool (segment-sum via tiny matmul) -> scratch cols 0:Hp
    pool_ref[:, 0:Hp] = jnp.dot(P, h, preferred_element_type=f32)

    for l in range(L):
        h_in = h
        # GIN aggregation: (1 + eps) * h + sum_{neighbors} h  (dense block matmul)
        neigh = jnp.dot(A, h.astype(bf16), preferred_element_type=f32)
        hl = ope_ref[l] * h + neigh                       # (1+eps) scalar from SMEM
        # ApplyNodeFunc: Linear -> BN -> ReLU -> Linear -> BN -> ReLU
        # (eval-mode BNs are folded into W1/b1 and W2/b2 on the host)
        z = jnp.dot(hl.astype(bf16), W1_ref[l], preferred_element_type=f32) + b1_ref[l]
        z = jnp.maximum(z, 0.0)
        z = jnp.dot(z.astype(bf16), W2_ref[l], preferred_element_type=f32) + b2_ref[l]
        h = jnp.maximum(z, 0.0)
        # graph_norm, bn_node_h (pre-folded scale/shift), ReLU, residual
        bng = bng_ref[l]                                  # (2, Hp)
        h = jnp.maximum(bng[0:1] * (h * snorm) + bng[1:2], 0.0)
        h = h_in + h
        # per-layer masked sum-pool readout -> scratch cols [(l+1)*Hp : (l+2)*Hp]
        pool_ref[:, (l + 1) * Hp:(l + 2) * Hp] = jnp.dot(P, h,
                                                         preferred_element_type=f32)

    # single fused prediction-head matmul over all L+1 pooled reps
    out_ref[...] = (jnp.dot(pool_ref[...], Wp_ref[...],
                            preferred_element_type=f32) + bp_ref[...])
    # TODO(synk): projection_head (head=True), return_graph and forward_imp paths of
    # the original module are not exercised by the default mlp=True path; omitted.


# ---------------------------------------------------------------------------
# Wrapper
# ---------------------------------------------------------------------------
def ginnet_forward(kp, h, A, snorm_n, P, n_classes):
    """kp: folded/padded kernel params.
    h:(NB,Mblk,in_dim) bf16, A:(NB,Mblk,Mblk) bf16, snorm_n:(NB,Mblk,1) f32,
    P:(NB,Gblk,Mblk) f32 (graph membership / node-validity pooling matrix).
    Returns (NB*Gblk, n_classes) f32 scores."""
    NB, Mblk, IN = h.shape
    Gblk = P.shape[1]
    L = kp["W1"].shape[0]
    Hp = kp["W1"].shape[-1]
    Cp = kp["Wp"].shape[-1]

    def const(x):
        nd = x.ndim
        return pl.BlockSpec(x.shape, lambda g, n=nd: (0,) * n)

    def per_block(shape):
        return pl.BlockSpec((None,) + shape, lambda g: (g, 0, 0))

    param_bytes = sum(int(v.size) * v.dtype.itemsize for v in kp.values())
    flops_block = 2 * (Mblk * IN * Hp
                       + L * (Mblk * Mblk * Hp + 2 * Mblk * Hp * Hp + Gblk * Mblk * Hp)
                       + Gblk * (L + 1) * Hp * Cp)
    flops = int(NB * flops_block)
    bytes_accessed = int(h.size * h.dtype.itemsize + A.size * A.dtype.itemsize
                         + snorm_n.size * 4 + P.size * 4 + param_bytes
                         + NB * Gblk * Cp * 4)

    out = pl.pallas_call(
        ginnet_kernel,
        grid=(NB,),
        out_shape=jax.ShapeDtypeStruct((NB, Gblk, Cp), jnp.float32),
        in_specs=[
            per_block((Mblk, IN)),                            # h   (true in_dim lanes)
            per_block((Mblk, Mblk)),                          # block-diagonal adjacency
            per_block((Mblk, 1)),                             # snorm_n
            per_block((Gblk, Mblk)),                          # pooling / validity mask
            pl.BlockSpec(memory_space=pltpu.MemorySpace.SMEM),  # 1 + eps scalars (L,)
            const(kp["Wemb"]), const(kp["bemb"]),             # embedding_h
            const(kp["W1"]), const(kp["b1"]),                 # W1/b1 (bn1 folded)
            const(kp["W2"]), const(kp["b2"]),                 # W2/b2 (bn_apply folded)
            const(kp["bng"]),                                 # bn_node_h scale/shift
            const(kp["Wp"]), const(kp["bp"]),                 # fused prediction head
        ],
        out_specs=pl.BlockSpec((None, Gblk, Cp), lambda g: (g, 0, 0)),
        scratch_shapes=[pltpu.VMEM((Gblk, (L + 1) * Hp), jnp.float32)],
        compiler_params=pltpu.CompilerParams(
            dimension_semantics=("parallel",)),
        cost_estimate=pl.CostEstimate(flops=flops, transcendentals=0,
                                      bytes_accessed=bytes_accessed),
    )(h, A, snorm_n, P, kp["ope"], kp["Wemb"], kp["bemb"],
      kp["W1"], kp["b1"], kp["W2"], kp["b2"], kp["bng"],
      kp["Wp"], kp["bp"])
    return out.reshape(NB * Gblk, Cp)[:, :n_classes]


# ---------------------------------------------------------------------------
# Host-side param folding + lane padding
# ---------------------------------------------------------------------------
def prepare_params(p, Hp, Cp):
    f32, bf16 = jnp.float32, jnp.bfloat16
    L = p["W1"].shape[0]
    IN = p["Wemb"].shape[0]

    def fold(W, b, bn):
        gamma, beta, mean, var = bn[:, 0], bn[:, 1], bn[:, 2], bn[:, 3]   # (L, H)
        s = gamma * jax.lax.rsqrt(var + BN_EPS)
        t = beta - mean * s
        return W * s[:, None, :], b * s[:, None, :] + t[:, None, :]

    W1f, b1f = fold(p["W1"], p["b1"], p["bn1"])
    W2f, b2f = fold(p["W2"], p["b2"], p["bna"])

    g, b_, m, v = p["bng"][:, 0], p["bng"][:, 1], p["bng"][:, 2], p["bng"][:, 3]
    sg = g * jax.lax.rsqrt(v + BN_EPS)
    tg = b_ - m * sg
    bng = jnp.stack([sg, tg], axis=1)                                   # (L, 2, H)

    def pad(x, shape, dtype):
        return jnp.pad(x, [(0, t - s) for s, t in zip(x.shape, shape)]).astype(dtype)

    # fused readout: concatenate the L+1 heads along the contraction dim
    Wp_cat = pad(p["Wp"], (L + 1, Hp, Cp), f32).reshape((L + 1) * Hp, Cp)
    bp_sum = pad(jnp.sum(p["bp"], axis=0), (1, Cp), f32)

    return {
        "ope":  (1.0 + p["eps"][:, 0]).astype(f32),       # (L,) scalars -> SMEM
        "Wemb": pad(p["Wemb"], (IN, Hp), bf16),
        "bemb": pad(p["bemb"], (1, Hp), f32),
        "W1":   pad(W1f, (L, Hp, Hp), bf16),
        "b1":   pad(b1f, (L, 1, Hp), f32),
        "W2":   pad(W2f, (L, Hp, Hp), bf16),
        "b2":   pad(b2f, (L, 1, Hp), f32),
        "bng":  pad(bng, (L, 2, Hp), f32),
        "Wp":   Wp_cat,                                    # ((L+1)*Hp, Cp)
        "bp":   bp_sum,                                    # (1, Cp)
    }


# ---------------------------------------------------------------------------
# Pure-JAX f32 reference (unfolded BN, dense adjacency, one-hot readout)
# ---------------------------------------------------------------------------
def ginnet_ref(params, h, A, snorm_n, P):
    L = params["W1"].shape[0]
    h = h @ params["Wemb"] + params["bemb"]
    pooled = P @ h
    score = pooled @ params["Wp"][0] + params["bp"][0]
    for l in range(L):
        h_in = h
        neigh = A @ h
        h = (1.0 + params["eps"][l, 0]) * h + neigh
        z = h @ params["W1"][l] + params["b1"][l]
        z = jnp.maximum(_bn(z, params["bn1"][l]), 0.0)
        z = z @ params["W2"][l] + params["b2"][l]
        h = jnp.maximum(_bn(z, params["bna"][l]), 0.0)
        h = h * snorm_n
        h = _bn(h, params["bng"][l])
        h = jnp.maximum(h, 0.0)
        h = h_in + h
        pooled = P @ h
        score = score + pooled @ params["Wp"][l + 1] + params["bp"][l + 1]
    return score


if __name__ == "__main__":
    # 8 graphs x 16 nodes per super-block -> Mblk=128 node rows (fills v5e MXU rows);
    # on v6e/v7x set GRAPHS_PER_BLOCK=16 for Mblk=256.  Keep NUM_BLOCKS >= 2 so the
    # "parallel" grid axis can be sharded across both v7x TensorCores.
    GRAPHS_PER_BLOCK, NODES_PER_GRAPH, NUM_BLOCKS = 8, 16, 2
    N_GRAPHS = GRAPHS_PER_BLOCK * NUM_BLOCKS
    Mblk = GRAPHS_PER_BLOCK * NODES_PER_GRAPH
    N = N_GRAPHS * NODES_PER_GRAPH                  # 256 nodes total
    IN_DIM, HIDDEN, N_CLASSES, L = 8, 32, 10, 2
    Hp, Cp = 128, 128                               # lane-padded hidden / class dims

    key = jax.random.PRNGKey(0)
    ks = iter(jax.random.split(key, 64))

    # node features
    h = jax.random.normal(next(ks), (N, IN_DIM), dtype=jnp.float32)

    # block-diagonal symmetric adjacency (a batched DGL graph has no cross-graph edges)
    blocks = []
    for _ in range(N_GRAPHS):
        a = (jax.random.uniform(next(ks), (NODES_PER_GRAPH, NODES_PER_GRAPH)) < 0.3)
        a = a.astype(jnp.float32)
        a = jnp.maximum(a, a.T) * (1.0 - jnp.eye(NODES_PER_GRAPH, dtype=jnp.float32))
        blocks.append(a)
    A_full = jax.scipy.linalg.block_diag(*blocks).astype(jnp.float32)   # (N, N)

    # snorm_n = 1/sqrt(num_nodes in the node's graph)
    snorm_n = jnp.full((N, 1), 1.0 / float(NODES_PER_GRAPH) ** 0.5, dtype=jnp.float32)

    # one-hot graph membership (reference over the whole batch)
    graph_id = jnp.repeat(jnp.arange(N_GRAPHS), NODES_PER_GRAPH)
    P_full = jax.nn.one_hot(graph_id, N_GRAPHS, dtype=jnp.float32).T    # (G, N)

    def lin(k, fan_in, fan_out):
        return 0.1 * jax.random.normal(k, (fan_in, fan_out), dtype=jnp.float32)

    def bn_params(k, L_, H_):
        k1, k2, k3, k4 = jax.random.split(k, 4)
        gamma = 1.0 + 0.1 * jax.random.normal(k1, (L_, 1, H_), dtype=jnp.float32)
        beta = 0.1 * jax.random.normal(k2, (L_, 1, H_), dtype=jnp.float32)
        mean = 0.05 * jax.random.normal(k3, (L_, 1, H_), dtype=jnp.float32)
        var = 1.0 + 0.1 * jax.random.uniform(k4, (L_, 1, H_), dtype=jnp.float32)
        return jnp.concatenate([gamma, beta, mean, var], axis=1)        # (L, 4, H)

    params = {
        "eps": 0.05 * jnp.arange(1, L + 1, dtype=jnp.float32).reshape(L, 1),
        "Wemb": lin(next(ks), IN_DIM, HIDDEN),
        "bemb": 0.05 * jax.random.normal(next(ks), (1, HIDDEN), dtype=jnp.float32),
        "W1": jnp.stack([lin(next(ks), HIDDEN, HIDDEN) for _ in range(L)]),
        "b1": 0.05 * jax.random.normal(next(ks), (L, 1, HIDDEN), dtype=jnp.float32),
        "W2": jnp.stack([lin(next(ks), HIDDEN, HIDDEN) for _ in range(L)]),
        "b2": 0.05 * jax.random.normal(next(ks), (L, 1, HIDDEN), dtype=jnp.float32),
        "bn1": bn_params(next(ks), L, HIDDEN),    # BN inside the MLP
        "bna": bn_params(next(ks), L, HIDDEN),    # BN in ApplyNodeFunc
        "bng": bn_params(next(ks), L, HIDDEN),    # bn_node_h in GINLayer
        "Wp": jnp.stack([lin(next(ks), HIDDEN, N_CLASSES) for _ in range(L + 1)]),
        "bp": 0.05 * jax.random.normal(next(ks), (L + 1, 1, N_CLASSES), dtype=jnp.float32),
    }

    # kernel-side inputs: 8 graphs per super-block, block-diagonal A, bf16 MXU operands
    h_k = h.reshape(NUM_BLOCKS, Mblk, IN_DIM).astype(jnp.bfloat16)
    A_k = jnp.stack([
        jax.scipy.linalg.block_diag(
            *blocks[b * GRAPHS_PER_BLOCK:(b + 1) * GRAPHS_PER_BLOCK])
        for b in range(NUM_BLOCKS)]).astype(jnp.bfloat16)               # 0/1: exact
    snorm_k = snorm_n.reshape(NUM_BLOCKS, Mblk, 1)
    gid_blk = jnp.repeat(jnp.arange(GRAPHS_PER_BLOCK), NODES_PER_GRAPH)
    P_blk = jax.nn.one_hot(gid_blk, GRAPHS_PER_BLOCK, dtype=jnp.float32).T  # (Gblk, Mblk)
    P_k = jnp.tile(P_blk[None], (NUM_BLOCKS, 1, 1))

    kp = prepare_params(params, Hp, Cp)

    out = ginnet_forward(kp, h_k, A_k, snorm_k, P_k, N_CLASSES)
    out = jax.block_until_ready(out)

    ref = ginnet_ref(params, h, A_full, snorm_n, P_full)
    assert out.shape == (N_GRAPHS, N_CLASSES)
    err = float(jnp.max(jnp.abs(out - ref)))
    scale = float(jnp.max(jnp.abs(ref))) + 1e-6
    assert err / scale < 3e-2, f"kernel/reference mismatch: abs {err}, rel {err / scale}"
    print("KERNEL_OK")
</pallas_src>

<mosaic_0001>
module attributes {stable_mosaic.version = 11 : i64} {
  func.func @ginnet_kernel(%arg0: i32, %arg1: memref<1x128x8xbf16, #tpu.memory_space<vmem>>, %arg2: memref<1x128x128xbf16, #tpu.memory_space<vmem>>, %arg3: memref<1x128x1xf32, #tpu.memory_space<vmem>>, %arg4: memref<1x8x128xf32, #tpu.memory_space<vmem>>, %arg5: memref<2xf32, #tpu.memory_space<smem>>, %arg6: memref<8x128xbf16, #tpu.memory_space<vmem>>, %arg7: memref<1x128xf32, #tpu.memory_space<vmem>>, %arg8: memref<2x128x128xbf16, #tpu.memory_space<vmem>>, %arg9: memref<2x1x128xf32, #tpu.memory_space<vmem>>, %arg10: memref<2x128x128xbf16, #tpu.memory_space<vmem>>, %arg11: memref<2x1x128xf32, #tpu.memory_space<vmem>>, %arg12: memref<2x2x128xf32, #tpu.memory_space<vmem>>, %arg13: memref<384x128xf32, #tpu.memory_space<vmem>>, %arg14: memref<1x128xf32, #tpu.memory_space<vmem>>, %arg15: memref<1x8x128xf32, #tpu.memory_space<vmem>>, %arg16: memref<8x384xf32, #tpu.memory_space<vmem>>) attributes {dimension_semantics = [#tpu.dimension_semantics<parallel>], iteration_bounds = array<i64: 2>, scalar_prefetch = 0 : i64, scratch_operands = 1 : i64, tpu.core_type = #tpu.core_type<tc>, window_params = [{transform_indices = @transform_0, window_bounds = array<i64: 1, 128, 8>}, {transform_indices = @transform_1, window_bounds = array<i64: 1, 128, 128>}, {transform_indices = @transform_2, window_bounds = array<i64: 1, 128, 1>}, {transform_indices = @transform_3, window_bounds = array<i64: 1, 8, 128>}, {transform_indices = @transform_4, window_bounds = array<i64: 2>}, {pipeline_mode = #tpu.pipeline_mode<synchronous>, transform_indices = @transform_5, window_bounds = array<i64: 8, 128>}, {pipeline_mode = #tpu.pipeline_mode<synchronous>, transform_indices = @transform_6, window_bounds = array<i64: 1, 128>}, {pipeline_mode = #tpu.pipeline_mode<synchronous>, transform_indices = @transform_7, window_bounds = array<i64: 2, 128, 128>}, {pipeline_mode = #tpu.pipeline_mode<synchronous>, transform_indices = @transform_8, window_bounds = array<i64: 2, 1, 128>}, {pipeline_mode = #tpu.pipeline_mode<synchronous>, transform_indices = @transform_9, window_bounds = array<i64: 2, 128, 128>}, {pipeline_mode = #tpu.pipeline_mode<synchronous>, transform_indices = @transform_10, window_bounds = array<i64: 2, 1, 128>}, {pipeline_mode = #tpu.pipeline_mode<synchronous>, transform_indices = @transform_11, window_bounds = array<i64: 2, 2, 128>}, {pipeline_mode = #tpu.pipeline_mode<synchronous>, transform_indices = @transform_12, window_bounds = array<i64: 384, 128>}, {pipeline_mode = #tpu.pipeline_mode<synchronous>, transform_indices = @transform_13, window_bounds = array<i64: 1, 128>}, {transform_indices = @transform_14, window_bounds = array<i64: 1, 8, 128>}]} {
    %c0 = arith.constant 0 : index
    %c0_0 = arith.constant 0 : index
    %c0_1 = arith.constant 0 : index
    %0 = vector.load %arg2[%c0, %c0_0, %c0_1] : memref<1x128x128xbf16, #tpu.memory_space<vmem>>, vector<1x128x128xbf16>
    %1 = vector.shape_cast %0 : vector<1x128x128xbf16> to vector<128x128xbf16>
    %c0_2 = arith.constant 0 : index
    %c0_3 = arith.constant 0 : index
    %c0_4 = arith.constant 0 : index
    %2 = vector.load %arg4[%c0_2, %c0_3, %c0_4] : memref<1x8x128xf32, #tpu.memory_space<vmem>>, vector<1x8x128xf32>
    %3 = vector.shape_cast %2 : vector<1x8x128xf32> to vector<8x128xf32>
    %c0_5 = arith.constant 0 : index
    %c0_6 = arith.constant 0 : index
    %c0_7 = arith.constant 0 : index
    %4 = vector.load %arg3[%c0_5, %c0_6, %c0_7] : memref<1x128x1xf32, #tpu.memory_space<vmem>>, vector<1x128x1xf32>
    %5 = vector.shape_cast %4 : vector<1x128x1xf32> to vector<128x1xf32>
    %c0_8 = arith.constant 0 : index
    %c0_9 = arith.constant 0 : index
    %c0_10 = arith.constant 0 : index
    %6 = vector.load %arg1[%c0_8, %c0_9, %c0_10] : memref<1x128x8xbf16, #tpu.memory_space<vmem>>, vector<1x128x8xbf16>
    %7 = vector.shape_cast %6 : vector<1x128x8xbf16> to vector<128x8xbf16>
    %c0_11 = arith.constant 0 : index
    %c0_12 = arith.constant 0 : index
    %8 = vector.load %arg6[%c0_11, %c0_12] : memref<8x128xbf16, #tpu.memory_space<vmem>>, vector<8x128xbf16>
    %cst = arith.constant dense<0.000000e+00> : vector<128x128xf32>
    %9 = tpu.matmul %7, %8, %cst {dimension_numbers = #tpu.dot_dimension_numbers<[1], [0], [0], [1], [0, 0, 1, 1], [], []>} : vector<128x8xbf16>, vector<8x128xbf16>, vector<128x128xf32> -> vector<128x128xf32>
    %c0_13 = arith.constant 0 : index
    %c0_14 = arith.constant 0 : index
    %10 = vector.load %arg7[%c0_13, %c0_14] : memref<1x128xf32, #tpu.memory_space<vmem>>, vector<1x128xf32>
    %11 = vector.broadcast %10 : vector<1x128xf32> to vector<128x128xf32>
    %12 = arith.addf %9, %11 : vector<128x128xf32>
    %cst_15 = arith.constant dense<0.000000e+00> : vector<8x128xf32>
    %13 = tpu.matmul %3, %12, %cst_15 {dimension_numbers = #tpu.dot_dimension_numbers<[1], [0], [0], [1], [0, 0, 1, 1], [], []>} : vector<8x128xf32>, vector<128x128xf32>, vector<8x128xf32> -> vector<8x128xf32>
    %c0_16 = arith.constant 0 : index
    %c0_17 = arith.constant 0 : index
    %14 = vector.load %arg16[%c0_16, %c0_17] : memref<8x384xf32, #tpu.memory_space<vmem>>, vector<8x128xf32>
    tpu.vector_store %arg16[%c0_16, %c0_17], %13 {strides = array<i32>} : memref<8x384xf32, #tpu.memory_space<vmem>>, vector<8x128xf32>,
    %15 = arith.truncf %12 : vector<128x128xf32> to vector<128x128xbf16>
    %cst_18 = arith.constant dense<0.000000e+00> : vector<128x128xf32>
    %16 = tpu.matmul %1, %15, %cst_18 {dimension_numbers = #tpu.dot_dimension_numbers<[1], [0], [0], [1], [0, 0, 1, 1], [], []>} : vector<128x128xbf16>, vector<128x128xbf16>, vector<128x128xf32> -> vector<128x128xf32>
    %c0_19 = arith.constant 0 : index
    %17 = memref.load %arg5[%c0_19] : memref<2xf32, #tpu.memory_space<smem>>
    %18 = vector.broadcast %17 : f32 to vector<128x128xf32>
    %19 = arith.mulf %18, %12 : vector<128x128xf32>
    %20 = arith.addf %19, %16 : vector<128x128xf32>
    %21 = arith.truncf %20 : vector<128x128xf32> to vector<128x128xbf16>
    %c0_20 = arith.constant 0 : index
    %c0_21 = arith.constant 0 : index
    %c0_22 = arith.constant 0 : index
    %22 = vector.load %arg8[%c0_20, %c0_21, %c0_22] : memref<2x128x128xbf16, #tpu.memory_space<vmem>>, vector<1x128x128xbf16>
    %23 = vector.shape_cast %22 : vector<1x128x128xbf16> to vector<128x128xbf16>
    %cst_23 = arith.constant dense<0.000000e+00> : vector<128x128xf32>
    %24 = tpu.matmul %21, %23, %cst_23 {dimension_numbers = #tpu.dot_dimension_numbers<[1], [0], [0], [1], [0, 0, 1, 1], [], []>} : vector<128x128xbf16>, vector<128x128xbf16>, vector<128x128xf32> -> vector<128x128xf32>
    %c0_24 = arith.constant 0 : index
    %c0_25 = arith.constant 0 : index
    %c0_26 = arith.constant 0 : index
    %25 = vector.load %arg9[%c0_24, %c0_25, %c0_26] : memref<2x1x128xf32, #tpu.memory_space<vmem>>, vector<1x1x128xf32>
    %26 = vector.shape_cast %25 : vector<1x1x128xf32> to vector<1x128xf32>
    %27 = vector.broadcast %26 : vector<1x128xf32> to vector<128x128xf32>
    %28 = arith.addf %24, %27 : vector<128x128xf32>
    %cst_27 = arith.constant 0.000000e+00 : f32
    %29 = vector.broadcast %cst_27 : f32 to vector<128x128xf32>
    %30 = arith.maximumf %28, %29 : vector<128x128xf32>
    %31 = arith.truncf %30 : vector<128x128xf32> to vector<128x128xbf16>
    %c0_28 = arith.constant 0 : index
    %c0_29 = arith.constant 0 : index
    %c0_30 = arith.constant 0 : index
    %32 = vector.load %arg10[%c0_28, %c0_29, %c0_30] : memref<2x128x128xbf16, #tpu.memory_space<vmem>>, vector<1x128x128xbf16>
    %33 = vector.shape_cast %32 : vector<1x128x128xbf16> to vector<128x128xbf16>
    %cst_31 = arith.constant dense<0.000000e+00> : vector<128x128xf32>
    %34 = tpu.matmul %31, %33, %cst_31 {dimension_numbers = #tpu.dot_dimension_numbers<[1], [0], [0], [1], [0, 0, 1, 1], [], []>} : vector<128x128xbf16>, vector<128x128xbf16>, vector<128x128xf32> -> vector<128x128xf32>
    %c0_32 = arith.constant 0 : index
    %c0_33 = arith.constant 0 : index
    %c0_34 = arith.constant 0 : index
    %35 = vector.load %arg11[%c0_32, %c0_33, %c0_34] : memref<2x1x128xf32, #tpu.memory_space<vmem>>, vector<1x1x128xf32>
    %36 = vector.shape_cast %35 : vector<1x1x128xf32> to vector<1x128xf32>
    %37 = vector.broadcast %36 : vector<1x128xf32> to vector<128x128xf32>
    %38 = arith.addf %34, %37 : vector<128x128xf32>
    %cst_35 = arith.constant 0.000000e+00 : f32
    %39 = vector.broadcast %cst_35 : f32 to vector<128x128xf32>
    %40 = arith.maximumf %38, %39 : vector<128x128xf32>
    %c0_36 = arith.constant 0 : index
    %c0_37 = arith.constant 0 : index
    %c0_38 = arith.constant 0 : index
    %41 = vector.load %arg12[%c0_36, %c0_37, %c0_38] : memref<2x2x128xf32, #tpu.memory_space<vmem>>, vector<1x2x128xf32>
    %42 = vector.shape_cast %41 : vector<1x2x128xf32> to vector<2x128xf32>
    %43 = vector.extract_strided_slice %42 {offsets = [0, 0], sizes = [1, 128], strides = [1, 1]} : vector<2x128xf32> to vector<1x128xf32>
    %44 = vector.broadcast %5 : vector<128x1xf32> to vector<128x128xf32>
    %45 = arith.mulf %40, %44 : vector<128x128xf32>
    %46 = vector.broadcast %43 : vector<1x128xf32> to vector<128x128xf32>
    %47 = arith.mulf %46, %45 : vector<128x128xf32>
    %48 = vector.extract_strided_slice %42 {offsets = [1, 0], sizes = [1, 128], strides = [1, 1]} : vector<2x128xf32> to vector<1x128xf32>
    %49 = vector.broadcast %48 : vector<1x128xf32> to vector<128x128xf32>
    %50 = arith.addf %47, %49 : vector<128x128xf32>
    %cst_39 = arith.constant 0.000000e+00 : f32
    %51 = vector.broadcast %cst_39 : f32 to vector<128x128xf32>
    %52 = arith.maximumf %50, %51 : vector<128x128xf32>
    %53 = arith.addf %12, %52 : vector<128x128xf32>
    %cst_40 = arith.constant dense<0.000000e+00> : vector<8x128xf32>
    %54 = tpu.matmul %3, %53, %cst_40 {dimension_numbers = #tpu.dot_dimension_numbers<[1], [0], [0], [1], [0, 0, 1, 1], [], []>} : vector<8x128xf32>, vector<128x128xf32>, vector<8x128xf32> -> vector<8x128xf32>
    %c0_41 = arith.constant 0 : index
    %c128 = arith.constant 128 : index
    %55 = vector.load %arg16[%c0_41, %c128] : memref<8x384xf32, #tpu.memory_space<vmem>>, vector<8x128xf32>
    tpu.vector_store %arg16[%c0_41, %c128], %54 {strides = array<i32>} : memref<8x384xf32, #tpu.memory_space<vmem>>, vector<8x128xf32>,
    %56 = arith.truncf %53 : vector<128x128xf32> to vector<128x128xbf16>
    %cst_42 = arith.constant dense<0.000000e+00> : vector<128x128xf32>
    %57 = tpu.matmul %1, %56, %cst_42 {dimension_numbers = #tpu.dot_dimension_numbers<[1], [0], [0], [1], [0, 0, 1, 1], [], []>} : vector<128x128xbf16>, vector<128x128xbf16>, vector<128x128xf32> -> vector<128x128xf32>
    %c1 = arith.constant 1 : index
    %58 = memref.load %arg5[%c1] : memref<2xf32, #tpu.memory_space<smem>>
    %59 = vector.broadcast %58 : f32 to vector<128x128xf32>
    %60 = arith.mulf %59, %53 : vector<128x128xf32>
    %61 = arith.addf %60, %57 : vector<128x128xf32>
    %62 = arith.truncf %61 : vector<128x128xf32> to vector<128x128xbf16>
    %c1_43 = arith.constant 1 : index
    %c0_44 = arith.constant 0 : index
    %c0_45 = arith.constant 0 : index
    %63 = vector.load %arg8[%c1_43, %c0_44, %c0_45] : memref<2x128x128xbf16, #tpu.memory_space<vmem>>, vector<1x128x128xbf16>
    %64 = vector.shape_cast %63 : vector<1x128x128xbf16> to vector<128x128xbf16>
    %cst_46 = arith.constant dense<0.000000e+00> : vector<128x128xf32>
    %65 = tpu.matmul %62, %64, %cst_46 {dimension_numbers = #tpu.dot_dimension_numbers<[1], [0], [0], [1], [0, 0, 1, 1], [], []>} : vector<128x128xbf16>, vector<128x128xbf16>, vector<128x128xf32> -> vector<128x128xf32>
    %c1_47 = arith.constant 1 : index
    %c0_48 = arith.constant 0 : index
    %c0_49 = arith.constant 0 : index
    %66 = vector.load %arg9[%c1_47, %c0_48, %c0_49] : memref<2x1x128xf32, #tpu.memory_space<vmem>>, vector<1x1x128xf32>
    %67 = vector.shape_cast %66 : vector<1x1x128xf32> to vector<1x128xf32>
    %68 = vector.broadcast %67 : vector<1x128xf32> to vector<128x128xf32>
    %69 = arith.addf %65, %68 : vector<128x128xf32>
    %cst_50 = arith.constant 0.000000e+00 : f32
    %70 = vector.broadcast %cst_50 : f32 to vector<128x128xf32>
    %71 = arith.maximumf %69, %70 : vector<128x128xf32>
    %72 = arith.truncf %71 : vector<128x128xf32> to vector<128x128xbf16>
    %c1_51 = arith.constant 1 : index
    %c0_52 = arith.constant 0 : index
    %c0_53 = arith.constant 0 : index
    %73 = vector.load %arg10[%c1_51, %c0_52, %c0_53] : memref<2x128x128xbf16, #tpu.memory_space<vmem>>, vector<1x128x128xbf16>
    %74 = vector.shape_cast %73 : vector<1x128x128xbf16> to vector<128x128xbf16>
    %cst_54 = arith.constant dense<0.000000e+00> : vector<128x128xf32>
    %75 = tpu.matmul %72, %74, %cst_54 {dimension_numbers = #tpu.dot_dimension_numbers<[1], [0], [0], [1], [0, 0, 1, 1], [], []>} : vector<128x128xbf16>, vector<128x128xbf16>, vector<128x128xf32> -> vector<128x128xf32>
    %c1_55 = arith.constant 1 : index
    %c0_56 = arith.constant 0 : index
    %c0_57 = arith.constant 0 : index
    %76 = vector.load %arg11[%c1_55, %c0_56, %c0_57] : memref<2x1x128xf32, #tpu.memory_space<vmem>>, vector<1x1x128xf32>
    %77 = vector.shape_cast %76 : vector<1x1x128xf32> to vector<1x128xf32>
    %78 = vector.broadcast %77 : vector<1x128xf32> to vector<128x128xf32>
    %79 = arith.addf %75, %78 : vector<128x128xf32>
    %cst_58 = arith.constant 0.000000e+00 : f32
    %80 = vector.broadcast %cst_58 : f32 to vector<128x128xf32>
    %81 = arith.maximumf %79, %80 : vector<128x128xf32>
    %c1_59 = arith.constant 1 : index
    %c0_60 = arith.constant 0 : index
    %c0_61 = arith.constant 0 : index
    %82 = vector.load %arg12[%c1_59, %c0_60, %c0_61] : memref<2x2x128xf32, #tpu.memory_space<vmem>>, vector<1x2x128xf32>
    %83 = vector.shape_cast %82 : vector<1x2x128xf32> to vector<2x128xf32>
    %84 = vector.extract_strided_slice %83 {offsets = [0, 0], sizes = [1, 128], strides = [1, 1]} : vector<2x128xf32> to vector<1x128xf32>
    %85 = vector.broadcast %5 : vector<128x1xf32> to vector<128x128xf32>
    %86 = arith.mulf %81, %85 : vector<128x128xf32>
    %87 = vector.broadcast %84 : vector<1x128xf32> to vector<128x128xf32>
    %88 = arith.mulf %87, %86 : vector<128x128xf32>
    %89 = vector.extract_strided_slice %83 {offsets = [1, 0], sizes = [1, 128], strides = [1, 1]} : vector<2x128xf32> to vector<1x128xf32>
    %90 = vector.broadcast %89 : vector<1x128xf32> to vector<128x128xf32>
    %91 = arith.addf %88, %90 : vector<128x128xf32>
    %cst_62 = arith.constant 0.000000e+00 : f32
    %92 = vector.broadcast %cst_62 : f32 to vector<128x128xf32>
    %93 = arith.maximumf %91, %92 : vector<128x128xf32>
    %94 = arith.addf %53, %93 : vector<128x128xf32>
    %cst_63 = arith.constant dense<0.000000e+00> : vector<8x128xf32>
    %95 = tpu.matmul %3, %94, %cst_63 {dimension_numbers = #tpu.dot_dimension_numbers<[1], [0], [0], [1], [0, 0, 1, 1], [], []>} : vector<8x128xf32>, vector<128x128xf32>, vector<8x128xf32> -> vector<8x128xf32>
    %c0_64 = arith.constant 0 : index
    %c256 = arith.constant 256 : index
    %96 = vector.load %arg16[%c0_64, %c256] : memref<8x384xf32, #tpu.memory_space<vmem>>, vector<8x128xf32>
    tpu.vector_store %arg16[%c0_64, %c256], %95 {strides = array<i32>} : memref<8x384xf32, #tpu.memory_space<vmem>>, vector<8x128xf32>,
    %c0_65 = arith.constant 0 : index
    %c0_66 = arith.constant 0 : index
    %97 = vector.load %arg16[%c0_65, %c0_66] : memref<8x384xf32, #tpu.memory_space<vmem>>, vector<8x384xf32>
    %c0_67 = arith.constant 0 : index
    %c0_68 = arith.constant 0 : index
    %98 = vector.load %arg13[%c0_67, %c0_68] : memref<384x128xf32, #tpu.memory_space<vmem>>, vector<384x128xf32>
    %cst_69 = arith.constant dense<0.000000e+00> : vector<8x128xf32>
    %99 = tpu.matmul %97, %98, %cst_69 {dimension_numbers = #tpu.dot_dimension_numbers<[1], [0], [0], [1], [0, 0, 1, 1], [], []>} : vector<8x384xf32>, vector<384x128xf32>, vector<8x128xf32> -> vector<8x128xf32>
    %c0_70 = arith.constant 0 : index
    %c0_71 = arith.constant 0 : index
    %100 = vector.load %arg14[%c0_70, %c0_71] : memref<1x128xf32, #tpu.memory_space<vmem>>, vector<1x128xf32>
    %101 = vector.broadcast %100 : vector<1x128xf32> to vector<8x128xf32>
    %102 = arith.addf %99, %101 : vector<8x128xf32>
    %c0_72 = arith.constant 0 : index
    %c0_73 = arith.constant 0 : index
    %c0_74 = arith.constant 0 : index
    %103 = vector.load %arg15[%c0_72, %c0_73, %c0_74] : memref<1x8x128xf32, #tpu.memory_space<vmem>>, vector<1x8x128xf32>
    %104 = vector.shape_cast %103 : vector<1x8x128xf32> to vector<8x128xf32>
    %105 = vector.shape_cast %102 : vector<8x128xf32> to vector<1x8x128xf32>
    tpu.vector_store %arg15[%c0_72, %c0_73, %c0_74], %105 {strides = array<i32>} : memref<1x8x128xf32, #tpu.memory_space<vmem>>, vector<1x8x128xf32>,
    return
  }
  func.func @transform_0(%arg0: i32) -> (i32, i32, i32) {
    %c0_i32 = arith.constant 0 : i32
    %c0_i32_0 = arith.constant 0 : i32
    %c0_i32_1 = arith.constant 0 : i32
    return %arg0, %c0_i32, %c0_i32_0 : i32, i32, i32
  }
  func.func @transform_1(%arg0: i32) -> (i32, i32, i32) {
    %c0_i32 = arith.constant 0 : i32
    %c0_i32_0 = arith.constant 0 : i32
    %c0_i32_1 = arith.constant 0 : i32
    return %arg0, %c0_i32, %c0_i32_0 : i32, i32, i32
  }
  func.func @transform_2(%arg0: i32) -> (i32, i32, i32) {
    %c0_i32 = arith.constant 0 : i32
    %c0_i32_0 = arith.constant 0 : i32
    %c0_i32_1 = arith.constant 0 : i32
    return %arg0, %c0_i32, %c0_i32_0 : i32, i32, i32
  }
  func.func @transform_3(%arg0: i32) -> (i32, i32, i32) {
    %c0_i32 = arith.constant 0 : i32
    %c0_i32_0 = arith.constant 0 : i32
    %c0_i32_1 = arith.constant 0 : i32
    return %arg0, %c0_i32, %c0_i32_0 : i32, i32, i32
  }
  func.func @transform_4(%arg0: i32) -> i32 {
    %c0_i32 = arith.constant 0 : i32
    %c0_i32_0 = arith.constant 0 : i32
    return %c0_i32 : i32
  }
  func.func @transform_5(%arg0: i32) -> (i32, i32) {
    %c0_i32 = arith.constant 0 : i32
    %c0_i32_0 = arith.constant 0 : i32
    %c0_i32_1 = arith.constant 0 : i32
    return %c0_i32, %c0_i32_0 : i32, i32
  }
  func.func @transform_6(%arg0: i32) -> (i32, i32) {
    %c0_i32 = arith.constant 0 : i32
    %c0_i32_0 = arith.constant 0 : i32
    %c0_i32_1 = arith.constant 0 : i32
    return %c0_i32, %c0_i32_0 : i32, i32
  }
  func.func @transform_7(%arg0: i32) -> (i32, i32, i32) {
    %c0_i32 = arith.constant 0 : i32
    %c0_i32_0 = arith.constant 0 : i32
    %c0_i32_1 = arith.constant 0 : i32
    %c0_i32_2 = arith.constant 0 : i32
    return %c0_i32, %c0_i32_0, %c0_i32_1 : i32, i32, i32
  }
  func.func @transform_8(%arg0: i32) -> (i32, i32, i32) {
    %c0_i32 = arith.constant 0 : i32
    %c0_i32_0 = arith.constant 0 : i32
    %c0_i32_1 = arith.constant 0 : i32
    %c0_i32_2 = arith.constant 0 : i32
    return %c0_i32, %c0_i32_0, %c0_i32_1 : i32, i32, i32
  }
  func.func @transform_9(%arg0: i32) -> (i32, i32, i32) {
    %c0_i32 = arith.constant 0 : i32
    %c0_i32_0 = arith.constant 0 : i32
    %c0_i32_1 = arith.constant 0 : i32
    %c0_i32_2 = arith.constant 0 : i32
    return %c0_i32, %c0_i32_0, %c0_i32_1 : i32, i32, i32
  }
  func.func @transform_10(%arg0: i32) -> (i32, i32, i32) {
    %c0_i32 = arith.constant 0 : i32
    %c0_i32_0 = arith.constant 0 : i32
    %c0_i32_1 = arith.constant 0 : i32
    %c0_i32_2 = arith.constant 0 : i32
    return %c0_i32, %c0_i32_0, %c0_i32_1 : i32, i32, i32
  }
  func.func @transform_11(%arg0: i32) -> (i32, i32, i32) {
    %c0_i32 = arith.constant 0 : i32
    %c0_i32_0 = arith.constant 0 : i32
    %c0_i32_1 = arith.constant 0 : i32
    %c0_i32_2 = arith.constant 0 : i32
    return %c0_i32, %c0_i32_0, %c0_i32_1 : i32, i32, i32
  }
  func.func @transform_12(%arg0: i32) -> (i32, i32) {
    %c0_i32 = arith.constant 0 : i32
    %c0_i32_0 = arith.constant 0 : i32
    %c0_i32_1 = arith.constant 0 : i32
    return %c0_i32, %c0_i32_0 : i32, i32
  }
  func.func @transform_13(%arg0: i32) -> (i32, i32) {
    %c0_i32 = arith.constant 0 : i32
    %c0_i32_0 = arith.constant 0 : i32
    %c0_i32_1 = arith.constant 0 : i32
    return %c0_i32, %c0_i32_0 : i32, i32
  }
  func.func @transform_14(%arg0: i32) -> (i32, i32, i32) {
    %c0_i32 = arith.constant 0 : i32
    %c0_i32_0 = arith.constant 0 : i32
    %c0_i32_1 = arith.constant 0 : i32
    return %arg0, %c0_i32, %c0_i32_0 : i32, i32, i32
  }
}

</mosaic_0001>

<llo_original>
// kernel: tpu_custom_call.1
$region0: #{tpu_custom_call.1}
  #allocation0 [shape = 'u32[]', space=smem, size = 0x4, offset = 0x4, fixed_abs, tag = 'smem constant byte address 0x4 - core index']
  #allocation1 [shape = 'u32[144,128]{1,0:T(1,128)}', space=vmem, size = 0x12000, scoped, tag = 'internal scratch']
  #allocation2 [shape = 'f32[8,384]{1,0:T(8,128)}', space=vmem, size = 0x3000, scoped, tag = 'scratch operand']
  %s0 = inlined_call_operand.vmem [shape: bf16[2,128,8], index: 0, kind: input, shape index: {}]
  %s1 = inlined_call_operand.hbm [shape: bf16[2,128,128], index: 1, kind: input, shape index: {}]
  %s2 = inlined_call_operand.vmem [shape: f32[2,128,1], index: 2, kind: input, shape index: {}]
  %s3 = inlined_call_operand.vmem [shape: f32[2,8,128], index: 3, kind: input, shape index: {}]
  %s4 = inlined_call_operand.vmem [shape: f32[2], index: 4, kind: input, shape index: {}]
  %s5 = inlined_call_operand.vmem [shape: bf16[8,128], index: 5, kind: input, shape index: {}]
  %s6 = inlined_call_operand.vmem [shape: f32[1,128], index: 6, kind: input, shape index: {}]
  %s7 = inlined_call_operand.hbm [shape: bf16[2,128,128], index: 7, kind: input, shape index: {}]
  %s8 = inlined_call_operand.vmem [shape: f32[2,1,128], index: 8, kind: input, shape index: {}]
  %s9 = inlined_call_operand.hbm [shape: bf16[2,128,128], index: 9, kind: input, shape index: {}]
  %s10 = inlined_call_operand.vmem [shape: f32[2,1,128], index: 10, kind: input, shape index: {}]
  %s11 = inlined_call_operand.vmem [shape: f32[2,2,128], index: 11, kind: input, shape index: {}]
  %s12 = inlined_call_operand.vmem [shape: f32[384,128], index: 12, kind: input, shape index: {}]
  %s13 = inlined_call_operand.vmem [shape: f32[1,128], index: 13, kind: input, shape index: {}]
  %s14 = inlined_call_operand.hbm [shape: f32[2,8,128], index: 14, kind: output, shape index: {}]
  %s15 = sld [smem:[#allocation0]]
  $region105: #{tpu_custom_call.1} parent=0
    _
  %s17 = ssub.s32 1, %s15
  %s18 = scalar_select 0, %s17, %s15
  $region1: #{tpu_custom_call.1} parent=0
    #allocation3 [shape = 'u8[65536]{0}', space=vmem, size = 0x10000, scoped, tag = 'input window, operand 1']
    #allocation4 [shape = 's32[2]{0}', space=sflag, size = 0x8, scoped, tag = 'scoped memory for tpu_custom_call.1']
    #allocation5 [shape = 's32[2]{0}', space=sflag, size = 0x8, scoped, tag = 'scoped memory for tpu_custom_call.1']
    #allocation6 [shape = 's32[2]{0}', space=sflag, size = 0x8, scoped, tag = 'scoped memory for tpu_custom_call.1']
    #allocation7 [shape = 'u8[512]{0}', space=smem, size = 0x200, scoped, tag = 'input window, operand 4, single buffered']
    #allocation8 [shape = 'u8[65536]{0}', space=vmem, size = 0x10000, scoped, tag = 'input window, operand 7, single buffered']
    #allocation9 [shape = 's32[1]{0}', space=sflag, size = 0x4, scoped, tag = 'scoped memory for tpu_custom_call.1']
    #allocation10 [shape = 'u8[65536]{0}', space=vmem, size = 0x10000, scoped, tag = 'input window, operand 9, single buffered']
    #allocation11 [shape = 'u8[8192]{0}', space=vmem, size = 0x2000, scoped, tag = 'output window, operand 0']
    %19 = vsyncpa [#allocation4], 0
    %s20 = scalar_lea.sflag [#allocation4], 1
    %21 = vsyncpa %s20, 0
    %22 = vsyncpa [#allocation6], 0
    %23 = vsyncpa [#allocation9], 0
    %24 = vsyncpa [#allocation5], 0
    %s25 = scalar_lea.sflag [#allocation5], 1
    %26 = vsyncpa %s25, 0
    loop: start=0, step=1, limit=4
    $region2: #{tpu_custom_call.1} parent=1 // loop_pre_header
      _
    $region3: #{tpu_custom_call.1} parent=1 // loop_header
      %s28 = sphi 0, %s32
      %p29 = scmp.ge.s32.totalorder %s28, 4
      %s38 = sphi 0, %s40
      %s41 = sphi 0, %s38
      %s42 = sphi 0, %s41
      %s58 = sphi 0, %s42
      %s64 = sphi 0, %s66
      %s67 = sphi 0, %s64
      %s68 = sphi 0, %s67
      %s84 = sphi 0, %s68
      %s90 = sphi 0, %s92
      %s93 = sphi 0, %s90
      %s94 = sphi 0, %s93
      %s110 = sphi 0, %s94
      %s116 = sphi 0, %s118
      %s119 = sphi 0, %s116
      %s120 = sphi 0, %s119
      %s136 = sphi 0, %s120
      %s140 = sphi 0, %s140
      %s142 = sphi 0, %s140
      %s143 = sphi 0, %s142
      %s157 = sphi 0, %s143
      %s161 = sphi 0, %s161
      %s163 = sphi 0, %s161
      %s164 = sphi 0, %s163
      %s178 = sphi 0, %s164
      %s182 = sphi 0, %s182
      %s184 = sphi 0, %s182
      %s185 = sphi 0, %s184
      %s199 = sphi 0, %s185
      %s203 = sphi 0, %s203
      %s205 = sphi 0, %s203
      %s206 = sphi 0, %s205
      %s220 = sphi 0, %s206
      %s224 = sphi 0, %s224
      %s226 = sphi 0, %s224
      %s227 = sphi 0, %s226
      %s241 = sphi 0, %s227
      %s245 = sphi 0, %s245
      %s247 = sphi 0, %s245
      %s248 = sphi 0, %s247
      %s262 = sphi 0, %s248
      %s266 = sphi 0, %s266
      %s268 = sphi 0, %s266
      %s269 = sphi 0, %s268
      %s283 = sphi 0, %s269
      %s287 = sphi 0, %s287
      %s289 = sphi 0, %s287
      %s290 = sphi 0, %s289
      %s304 = sphi 0, %s290
      %s308 = sphi 0, %s308
      %s310 = sphi 0, %s308
      %s311 = sphi 0, %s310
      %s325 = sphi 0, %s311
      %s329 = sphi 0, %s329
      %s331 = sphi 0, %s329
      %s332 = sphi 0, %s331
      %s346 = sphi 0, %s332
      %s352 = sphi 0, %s354
      %s355 = sphi 0, %s352
      %s356 = sphi 0, %s355
      %s372 = sphi 0, %s356
    $region4: #{tpu_custom_call.1} parent=1 // loop_header_branch
      %31 = sbr.rel (%p29) target = $region8
    $region5: #{tpu_custom_call.1} parent=1 // loop_body
      %s33 = ssub.s32 %s28, 1
      %s34 = ssub.s32 %s28, 2
      %s35 = sadd.s32 %s28, 1
      %s36 = ssub.s32 %s28, %s35
      %p37 = scmp.eq.s32.totalorder %s36, 0
      %s39 = sadd.s32 %s38, 1
      %s40 = scalar_select %p37, %s38, %s39
      %p43 = pneg %p37
      %p44 = scmp.eq.s32.totalorder %s28, 1
      %p45 = por %p43, %p44
      %p46 = scmp.ne.s32.totalorder %s38, %s41
      %p47 = scmp.eq.s32.totalorder %s28, 0
      %p48 = por %p46, %p47
      %p49 = scmp.ne.s32.totalorder %s38, %s41
      %p50 = scmp.eq.s32.totalorder %s33, 1
      %p51 = por %p49, %p50
      %p52 = scmp.ne.s32.totalorder %s41, %s42
      %p53 = scmp.eq.s32.totalorder %s33, 0
      %p54 = por %p52, %p53
      %p55 = scmp.ne.s32.totalorder %s41, %s42
      %p56 = scmp.eq.s32.totalorder %s34, 1
      %p57 = por %p55, %p56
      %p59 = scmp.ne.s32.totalorder %s42, %s58
      %p60 = scmp.eq.s32.totalorder %s34, 0
      %p61 = por %p59, %p60
      %s62 = ssub.s32 %s28, %s35
      %p63 = scmp.eq.s32.totalorder %s62, 0
      %s65 = sadd.s32 %s64, 1
      %s66 = scalar_select %p63, %s64, %s65
      %p69 = pneg %p63
      %p70 = scmp.eq.s32.totalorder %s28, 1
      %p71 = por %p69, %p70
      %p72 = scmp.ne.s32.totalorder %s64, %s67
      %p73 = scmp.eq.s32.totalorder %s28, 0
      %p74 = por %p72, %p73
      %p75 = scmp.ne.s32.totalorder %s64, %s67
      %p76 = scmp.eq.s32.totalorder %s33, 1
      %p77 = por %p75, %p76
      %p78 = scmp.ne.s32.totalorder %s67, %s68
      %p79 = scmp.eq.s32.totalorder %s33, 0
      %p80 = por %p78, %p79
      %p81 = scmp.ne.s32.totalorder %s67, %s68
      %p82 = scmp.eq.s32.totalorder %s34, 1
      %p83 = por %p81, %p82
      %p85 = scmp.ne.s32.totalorder %s68, %s84
      %p86 = scmp.eq.s32.totalorder %s34, 0
      %p87 = por %p85, %p86
      %s88 = ssub.s32 %s28, %s35
      %p89 = scmp.eq.s32.totalorder %s88, 0
      %s91 = sadd.s32 %s90, 1
      %s92 = scalar_select %p89, %s90, %s91
      %p95 = pneg %p89
      %p96 = scmp.eq.s32.totalorder %s28, 1
      %p97 = por %p95, %p96
      %p98 = scmp.ne.s32.totalorder %s90, %s93
      %p99 = scmp.eq.s32.totalorder %s28, 0
      %p100 = por %p98, %p99
      %p101 = scmp.ne.s32.totalorder %s90, %s93
      %p102 = scmp.eq.s32.totalorder %s33, 1
      %p103 = por %p101, %p102
      %p104 = scmp.ne.s32.totalorder %s93, %s94
      %p105 = scmp.eq.s32.totalorder %s33, 0
      %p106 = por %p104, %p105
      %p107 = scmp.ne.s32.totalorder %s93, %s94
      %p108 = scmp.eq.s32.totalorder %s34, 1
      %p109 = por %p107, %p108
      %p111 = scmp.ne.s32.totalorder %s94, %s110
      %p112 = scmp.eq.s32.totalorder %s34, 0
      %p113 = por %p111, %p112
      %s114 = ssub.s32 %s28, %s35
      %p115 = scmp.eq.s32.totalorder %s114, 0
      %s117 = sadd.s32 %s116, 1
      %s118 = scalar_select %p115, %s116, %s117
      %p121 = pneg %p115
      %p122 = scmp.eq.s32.totalorder %s28, 1
      %p123 = por %p121, %p122
      %p124 = scmp.ne.s32.totalorder %s116, %s119
      %p125 = scmp.eq.s32.totalorder %s28, 0
      %p126 = por %p124, %p125
      %p127 = scmp.ne.s32.totalorder %s116, %s119
      %p128 = scmp.eq.s32.totalorder %s33, 1
      %p129 = por %p127, %p128
      %p130 = scmp.ne.s32.totalorder %s119, %s120
      %p131 = scmp.eq.s32.totalorder %s33, 0
      %p132 = por %p130, %p131
      %p133 = scmp.ne.s32.totalorder %s119, %s120
      %p134 = scmp.eq.s32.totalorder %s34, 1
      %p135 = por %p133, %p134
      %p137 = scmp.ne.s32.totalorder %s120, %s136
      %p138 = scmp.eq.s32.totalorder %s34, 0
      %p139 = por %p137, %p138
      %s141 = sadd.s32 %s140, 1
      %p144 = scmp.eq.s32.totalorder %s28, 1
      %p145 = scmp.ne.s32.totalorder %s140, %s142
      %p146 = scmp.eq.s32.totalorder %s28, 0
      %p147 = por %p145, %p146
      %p148 = scmp.ne.s32.totalorder %s140, %s142
      %p149 = scmp.eq.s32.totalorder %s33, 1
      %p150 = por %p148, %p149
      %p151 = scmp.ne.s32.totalorder %s142, %s143
      %p152 = scmp.eq.s32.totalorder %s33, 0
      %p153 = por %p151, %p152
      %p154 = scmp.ne.s32.totalorder %s142, %s143
      %p155 = scmp.eq.s32.totalorder %s34, 1
      %p156 = por %p154, %p155
      %p158 = scmp.ne.s32.totalorder %s143, %s157
      %p159 = scmp.eq.s32.totalorder %s34, 0
      %p160 = por %p158, %p159
      %s162 = sadd.s32 %s161, 1
      %p165 = scmp.eq.s32.totalorder %s28, 1
      %p166 = scmp.ne.s32.totalorder %s161, %s163
      %p167 = scmp.eq.s32.totalorder %s28, 0
      %p168 = por %p166, %p167
      %p169 = scmp.ne.s32.totalorder %s161, %s163
      %p170 = scmp.eq.s32.totalorder %s33, 1
      %p171 = por %p169, %p170
      %p172 = scmp.ne.s32.totalorder %s163, %s164
      %p173 = scmp.eq.s32.totalorder %s33, 0
      %p174 = por %p172, %p173
      %p175 = scmp.ne.s32.totalorder %s163, %s164
      %p176 = scmp.eq.s32.totalorder %s34, 1
      %p177 = por %p175, %p176
      %p179 = scmp.ne.s32.totalorder %s164, %s178
      %p180 = scmp.eq.s32.totalorder %s34, 0
      %p181 = por %p179, %p180
      %s183 = sadd.s32 %s182, 1
      %p186 = scmp.eq.s32.totalorder %s28, 1
      %p187 = scmp.ne.s32.totalorder %s182, %s184
      %p188 = scmp.eq.s32.totalorder %s28, 0
      %p189 = por %p187, %p188
      %p190 = scmp.ne.s32.totalorder %s182, %s184
      %p191 = scmp.eq.s32.totalorder %s33, 1
      %p192 = por %p190, %p191
      %p193 = scmp.ne.s32.totalorder %s184, %s185
      %p194 = scmp.eq.s32.totalorder %s33, 0
      %p195 = por %p193, %p194
      %p196 = scmp.ne.s32.totalorder %s184, %s185
      %p197 = scmp.eq.s32.totalorder %s34, 1
      %p198 = por %p196, %p197
      %p200 = scmp.ne.s32.totalorder %s185, %s199
      %p201 = scmp.eq.s32.totalorder %s34, 0
      %p202 = por %p200, %p201
      %s204 = sadd.s32 %s203, 1
      %p207 = scmp.eq.s32.totalorder %s28, 1
      %p208 = scmp.ne.s32.totalorder %s203, %s205
      %p209 = scmp.eq.s32.totalorder %s28, 0
      %p210 = por %p208, %p209
      %p211 = scmp.ne.s32.totalorder %s203, %s205
      %p212 = scmp.eq.s32.totalorder %s33, 1
      %p213 = por %p211, %p212
      %p214 = scmp.ne.s32.totalorder %s205, %s206
      %p215 = scmp.eq.s32.totalorder %s33, 0
      %p216 = por %p214, %p215
      %p217 = scmp.ne.s32.totalorder %s205, %s206
      %p218 = scmp.eq.s32.totalorder %s34, 1
      %p219 = por %p217, %p218
      %p221 = scmp.ne.s32.totalorder %s206, %s220
      %p222 = scmp.eq.s32.totalorder %s34, 0
      %p223 = por %p221, %p222
      %s225 = sadd.s32 %s224, 1
      %p228 = scmp.eq.s32.totalorder %s28, 1
      %p229 = scmp.ne.s32.totalorder %s224, %s226
      %p230 = scmp.eq.s32.totalorder %s28, 0
      %p231 = por %p229, %p230
      %p232 = scmp.ne.s32.totalorder %s224, %s226
      %p233 = scmp.eq.s32.totalorder %s33, 1
      %p234 = por %p232, %p233
      %p235 = scmp.ne.s32.totalorder %s226, %s227
      %p236 = scmp.eq.s32.totalorder %s33, 0
      %p237 = por %p235, %p236
      %p238 = scmp.ne.s32.totalorder %s226, %s227
      %p239 = scmp.eq.s32.totalorder %s34, 1
      %p240 = por %p238, %p239
      %p242 = scmp.ne.s32.totalorder %s227, %s241
      %p243 = scmp.eq.s32.totalorder %s34, 0
      %p244 = por %p242, %p243
      %s246 = sadd.s32 %s245, 1
      %p249 = scmp.eq.s32.totalorder %s28, 1
      %p250 = scmp.ne.s32.totalorder %s245, %s247
      %p251 = scmp.eq.s32.totalorder %s28, 0
      %p252 = por %p250, %p251
      %p253 = scmp.ne.s32.totalorder %s245, %s247
      %p254 = scmp.eq.s32.totalorder %s33, 1
      %p255 = por %p253, %p254
      %p256 = scmp.ne.s32.totalorder %s247, %s248
      %p257 = scmp.eq.s32.totalorder %s33, 0
      %p258 = por %p256, %p257
      %p259 = scmp.ne.s32.totalorder %s247, %s248
      %p260 = scmp.eq.s32.totalorder %s34, 1
      %p261 = por %p259, %p260
      %p263 = scmp.ne.s32.totalorder %s248, %s262
      %p264 = scmp.eq.s32.totalorder %s34, 0
      %p265 = por %p263, %p264
      %s267 = sadd.s32 %s266, 1
      %p270 = scmp.eq.s32.totalorder %s28, 1
      %p271 = scmp.ne.s32.totalorder %s266, %s268
      %p272 = scmp.eq.s32.totalorder %s28, 0
      %p273 = por %p271, %p272
      %p274 = scmp.ne.s32.totalorder %s266, %s268
      %p275 = scmp.eq.s32.totalorder %s33, 1
      %p276 = por %p274, %p275
      %p277 = scmp.ne.s32.totalorder %s268, %s269
      %p278 = scmp.eq.s32.totalorder %s33, 0
      %p279 = por %p277, %p278
      %p280 = scmp.ne.s32.totalorder %s268, %s269
      %p281 = scmp.eq.s32.totalorder %s34, 1
      %p282 = por %p280, %p281
      %p284 = scmp.ne.s32.totalorder %s269, %s283
      %p285 = scmp.eq.s32.totalorder %s34, 0
      %p286 = por %p284, %p285
      %s288 = sadd.s32 %s287, 1
      %p291 = scmp.eq.s32.totalorder %s28, 1
      %p292 = scmp.ne.s32.totalorder %s287, %s289
      %p293 = scmp.eq.s32.totalorder %s28, 0
      %p294 = por %p292, %p293
      %p295 = scmp.ne.s32.totalorder %s287, %s289
      %p296 = scmp.eq.s32.totalorder %s33, 1
      %p297 = por %p295, %p296
      %p298 = scmp.ne.s32.totalorder %s289, %s290
      %p299 = scmp.eq.s32.totalorder %s33, 0
      %p300 = por %p298, %p299
      %p301 = scmp.ne.s32.totalorder %s289, %s290
      %p302 = scmp.eq.s32.totalorder %s34, 1
      %p303 = por %p301, %p302
      %p305 = scmp.ne.s32.totalorder %s290, %s304
      %p306 = scmp.eq.s32.totalorder %s34, 0
      %p307 = por %p305, %p306
      %s309 = sadd.s32 %s308, 1
      %p312 = scmp.eq.s32.totalorder %s28, 1
      %p313 = scmp.ne.s32.totalorder %s308, %s310
      %p314 = scmp.eq.s32.totalorder %s28, 0
      %p315 = por %p313, %p314
      %p316 = scmp.ne.s32.totalorder %s308, %s310
      %p317 = scmp.eq.s32.totalorder %s33, 1
      %p318 = por %p316, %p317
      %p319 = scmp.ne.s32.totalorder %s310, %s311
      %p320 = scmp.eq.s32.totalorder %s33, 0
      %p321 = por %p319, %p320
      %p322 = scmp.ne.s32.totalorder %s310, %s311
      %p323 = scmp.eq.s32.totalorder %s34, 1
      %p324 = por %p322, %p323
      %p326 = scmp.ne.s32.totalorder %s311, %s325
      %p327 = scmp.eq.s32.totalorder %s34, 0
      %p328 = por %p326, %p327
      %s330 = sadd.s32 %s329, 1
      %p333 = scmp.eq.s32.totalorder %s28, 1
      %p334 = scmp.ne.s32.totalorder %s329, %s331
      %p335 = scmp.eq.s32.totalorder %s28, 0
      %p336 = por %p334, %p335
      %p337 = scmp.ne.s32.totalorder %s329, %s331
      %p338 = scmp.eq.s32.totalorder %s33, 1
      %p339 = por %p337, %p338
      %p340 = scmp.ne.s32.totalorder %s331, %s332
      %p341 = scmp.eq.s32.totalorder %s33, 0
      %p342 = por %p340, %p341
      %p343 = scmp.ne.s32.totalorder %s331, %s332
      %p344 = scmp.eq.s32.totalorder %s34, 1
      %p345 = por %p343, %p344
      %p347 = scmp.ne.s32.totalorder %s332, %s346
      %p348 = scmp.eq.s32.totalorder %s34, 0
      %p349 = por %p347, %p348
      %s350 = ssub.s32 %s28, %s35
      %p351 = scmp.eq.s32.totalorder %s350, 0
      %s353 = sadd.s32 %s352, 1
      %s354 = scalar_select %p351, %s352, %s353
      %p357 = pneg %p351
      %p358 = scmp.eq.s32.totalorder %s28, 1
      %p359 = por %p357, %p358
      %p360 = scmp.ne.s32.totalorder %s352, %s355
      %p361 = scmp.eq.s32.totalorder %s28, 0
      %p362 = por %p360, %p361
      %p363 = scmp.ne.s32.totalorder %s352, %s355
      %p364 = scmp.eq.s32.totalorder %s33, 1
      %p365 = por %p363, %p364
      %p366 = scmp.ne.s32.totalorder %s355, %s356
      %p367 = scmp.eq.s32.totalorder %s33, 0
      %p368 = por %p366, %p367
      %p369 = scmp.ne.s32.totalorder %s355, %s356
      %p370 = scmp.eq.s32.totalorder %s34, 1
      %p371 = por %p369, %p370
      %p373 = scmp.ne.s32.totalorder %s356, %s372
      %p374 = scmp.eq.s32.totalorder %s34, 0
      %p375 = por %p373, %p374
      %p376 = scmp.le.s32.totalorder 1, %s28
      %p377 = scmp.lt.s32.totalorder %s28, 3
      %p378 = pnand %p376, %p377
      %p379 = pneg %p378
      // Predicated region
      $region9: #{tpu_custom_call.1} parent=5 // pred_check
        _
      $region10: #{tpu_custom_call.1} parent=5 // pred_check_branch
        %381 = sbr.rel (%p378) target = $region12
      $region11: #{tpu_custom_call.1} parent=5 // pred_region
        %s382 = ssub.s32 %s28, 1
        // Predicated region
        $region13: #{tpu_custom_call.1} parent=11 // pred_check
          %p383 = pneg %p153
        $region14: #{tpu_custom_call.1} parent=11 // pred_check_branch
          %385 = sbr.rel (%p383) target = $region16
        $region15: #{tpu_custom_call.1} parent=11 // pred_region
          %s387 = ssub.s32 16, 16
          %388 = vsyncadd [#allocation6], %s387
          %s390 = sshll.u32 %s4, 4
          %s391 = int_to_ptr.vmem [resolvable:$true] %s390
          %393 = dma.vmem_to_smem %s391, 16, [#allocation7], [#allocation6]
        $region16: #{tpu_custom_call.1} parent=11 // pred_fallthru
          _
        // Predicated region
        $region17: #{tpu_custom_call.1} parent=11 // pred_check
          %p394 = pneg %p174
        $region18: #{tpu_custom_call.1} parent=11 // pred_check_branch
          %396 = sbr.rel (%p394) target = $region20
        $region19: #{tpu_custom_call.1} parent=11 // pred_region
          _
        $region20: #{tpu_custom_call.1} parent=11 // pred_fallthru
          _
        // Predicated region
        $region21: #{tpu_custom_call.1} parent=11 // pred_check
          %p397 = pneg %p195
        $region22: #{tpu_custom_call.1} parent=11 // pred_check_branch
          %399 = sbr.rel (%p397) target = $region24
        $region23: #{tpu_custom_call.1} parent=11 // pred_region
          _
        $region24: #{tpu_custom_call.1} parent=11 // pred_fallthru
          _
        // Predicated region
        $region25: #{tpu_custom_call.1} parent=11 // pred_check
          %p400 = pneg %p216
        $region26: #{tpu_custom_call.1} parent=11 // pred_check_branch
          %402 = sbr.rel (%p400) target = $region28
        $region27: #{tpu_custom_call.1} parent=11 // pred_region
          %s404 = ssub.s32 2048, 2048
          %405 = vsyncadd [#allocation9], %s404
          %s406 = sshll.u32 [#allocation8], 4
          %s407 = int_to_ptr.vmem [resolvable:$true] %s406
          %412 = dma.hbm_to_vmem [thread:$0]  %s7, 2048, %s407, [#allocation9], 64, 64, 4
        $region28: #{tpu_custom_call.1} parent=11 // pred_fallthru
          _
        // Predicated region
        $region29: #{tpu_custom_call.1} parent=11 // pred_check
          %p413 = pneg %p237
        $region30: #{tpu_custom_call.1} parent=11 // pred_check_branch
          %415 = sbr.rel (%p413) target = $region32
        $region31: #{tpu_custom_call.1} parent=11 // pred_region
          _
        $region32: #{tpu_custom_call.1} parent=11 // pred_fallthru
          _
        // Predicated region
        $region33: #{tpu_custom_call.1} parent=11 // pred_check
          %p416 = pneg %p258
        $region34: #{tpu_custom_call.1} parent=11 // pred_check_branch
          %418 = sbr.rel (%p416) target = $region36
        $region35: #{tpu_custom_call.1} parent=11 // pred_region
          %s420 = ssub.s32 2048, 2048
          %421 = vsyncadd [#allocation9], %s420
          %s422 = sshll.u32 [#allocation10], 4
          %s423 = int_to_ptr.vmem [resolvable:$true] %s422
          %428 = dma.hbm_to_vmem [thread:$0]  %s9, 2048, %s423, [#allocation9], 64, 64, 4
        $region36: #{tpu_custom_call.1} parent=11 // pred_fallthru
          _
        // Predicated region
        $region37: #{tpu_custom_call.1} parent=11 // pred_check
          %p429 = pneg %p279
        $region38: #{tpu_custom_call.1} parent=11 // pred_check_branch
          %431 = sbr.rel (%p429) target = $region40
        $region39: #{tpu_custom_call.1} parent=11 // pred_region
          _
        $region40: #{tpu_custom_call.1} parent=11 // pred_fallthru
          _
        // Predicated region
        $region41: #{tpu_custom_call.1} parent=11 // pred_check
          %p432 = pneg %p300
        $region42: #{tpu_custom_call.1} parent=11 // pred_check_branch
          %434 = sbr.rel (%p432) target = $region44
        $region43: #{tpu_custom_call.1} parent=11 // pred_region
          _
        $region44: #{tpu_custom_call.1} parent=11 // pred_fallthru
          _
        // Predicated region
        $region45: #{tpu_custom_call.1} parent=11 // pred_check
          %p435 = pneg %p321
        $region46: #{tpu_custom_call.1} parent=11 // pred_check_branch
          %437 = sbr.rel (%p435) target = $region48
        $region47: #{tpu_custom_call.1} parent=11 // pred_region
          _
        $region48: #{tpu_custom_call.1} parent=11 // pred_fallthru
          _
        // Predicated region
        $region49: #{tpu_custom_call.1} parent=11 // pred_check
          %p438 = pneg %p342
        $region50: #{tpu_custom_call.1} parent=11 // pred_check_branch
          %440 = sbr.rel (%p438) target = $region52
        $region51: #{tpu_custom_call.1} parent=11 // pred_region
          _
        $region52: #{tpu_custom_call.1} parent=11 // pred_fallthru
          _
      $region12: #{tpu_custom_call.1} parent=5 // pred_fallthru
        _
      %p441 = scmp.lt.s32.totalorder %s28, 2
      // Predicated region
      $region53: #{tpu_custom_call.1} parent=5 // pred_check
        %p442 = pneg %p441
      $region54: #{tpu_custom_call.1} parent=5 // pred_check_branch
        %444 = sbr.rel (%p442) target = $region56
      $region55: #{tpu_custom_call.1} parent=5 // pred_region
        // Predicated region
        $region57: #{tpu_custom_call.1} parent=55 // pred_check
          %p445 = pneg %p48
        $region58: #{tpu_custom_call.1} parent=55 // pred_check_branch
          %447 = sbr.rel (%p445) target = $region60
        $region59: #{tpu_custom_call.1} parent=55 // pred_region
          %p448 = scmp.lt.s32.totalorder %s28, 1
          %s449 = scalar_select %p448, %s28, 1
          %s450 = smul.addr %s449, 16
          %s451 = smul.addr %s450, 4
          %s452 = scalar_lea.vmem %s0, %s451
        $region60: #{tpu_custom_call.1} parent=55 // pred_fallthru
          _
        // Predicated region
        $region61: #{tpu_custom_call.1} parent=55 // pred_check
          %p453 = pneg %p74
        $region62: #{tpu_custom_call.1} parent=55 // pred_check_branch
          %455 = sbr.rel (%p453) target = $region64
        $region63: #{tpu_custom_call.1} parent=55 // pred_region
          %s456 = sand.u32 %s64, 1
          %s457 = scalar_lea.sflag [#allocation4], %s456
          %s458 = sand.u32 %s64, 1
          %s459 = smul.addr %s458, 64
          %s460 = scalar_lea.vmem [#allocation3], %s459
          %s462 = ssub.s32 1024, 1024
          %463 = vsyncadd %s457, %s462
          %s464 = smul.addr %s28, 16
          %s465 = smul.addr %s464, 64
          %s466 = scalar_lea.hbm %s1, %s465
          %s467 = sshll.u32 %s460, 4
          %s468 = int_to_ptr.vmem [resolvable:$true] %s467
          %473 = dma.hbm_to_vmem [thread:$0]  %s466, 1024, %s468, %s457, 64, 64, 4
        $region64: #{tpu_custom_call.1} parent=55 // pred_fallthru
          _
        // Predicated region
        $region65: #{tpu_custom_call.1} parent=55 // pred_check
          %p474 = pneg %p100
        $region66: #{tpu_custom_call.1} parent=55 // pred_check_branch
          %476 = sbr.rel (%p474) target = $region68
        $region67: #{tpu_custom_call.1} parent=55 // pred_region
          %p477 = scmp.lt.s32.totalorder %s28, 1
          %s478 = scalar_select %p477, %s28, 1
          %s479 = smul.addr %s478, 16
          %s480 = smul.addr %s479, 8
          %s481 = scalar_lea.vmem %s2, %s480
        $region68: #{tpu_custom_call.1} parent=55 // pred_fallthru
          _
        // Predicated region
        $region69: #{tpu_custom_call.1} parent=55 // pred_check
          %p482 = pneg %p126
        $region70: #{tpu_custom_call.1} parent=55 // pred_check_branch
          %484 = sbr.rel (%p482) target = $region72
        $region71: #{tpu_custom_call.1} parent=55 // pred_region
          %p485 = scmp.lt.s32.totalorder %s28, 1
          %s486 = scalar_select %p485, %s28, 1
          %s487 = smul.addr %s486, 8
          %s488 = scalar_lea.vmem %s3, %s487
        $region72: #{tpu_custom_call.1} parent=55 // pred_fallthru
          _
      $region56: #{tpu_custom_call.1} parent=5 // pred_fallthru
        _
      %p489 = scmp.le.s32.totalorder 1, %s28
      %p490 = scmp.lt.s32.totalorder %s28, 3
      %p491 = pnand %p489, %p490
      %p492 = pneg %p491
      // Predicated region
      $region73: #{tpu_custom_call.1} parent=5 // pred_check
        _
      $region74: #{tpu_custom_call.1} parent=5 // pred_check_branch
        %494 = sbr.rel (%p491) target = $region76
      $region75: #{tpu_custom_call.1} parent=5 // pred_region
        %s495 = ssub.s32 %s28, 1
        %s496 = sand.u32 %s67, 1
        %s497 = scalar_lea.sflag [#allocation4], %s496
        %s498 = sand.u32 %s67, 1
        %s499 = smul.addr %s498, 64
        %s500 = scalar_lea.vmem [#allocation3], %s499
        // Predicated region
        $region77: #{tpu_custom_call.1} parent=75 // pred_check
          %p501 = pneg %p80
        $region78: #{tpu_custom_call.1} parent=75 // pred_check_branch
          %503 = sbr.rel (%p501) target = $region80
        $region79: #{tpu_custom_call.1} parent=75 // pred_region
          %504 = dma.done %s497, 1024
        $region80: #{tpu_custom_call.1} parent=75 // pred_fallthru
          _
        // Predicated region
        $region81: #{tpu_custom_call.1} parent=75 // pred_check
          %p505 = pneg %p153
        $region82: #{tpu_custom_call.1} parent=75 // pred_check_branch
          %507 = sbr.rel (%p505) target = $region84
        $region83: #{tpu_custom_call.1} parent=75 // pred_region
          %508 = dma.done [#allocation6], 16
        $region84: #{tpu_custom_call.1} parent=75 // pred_fallthru
          _
        // Predicated region
        $region85: #{tpu_custom_call.1} parent=75 // pred_check
          %p509 = pneg %p216
        $region86: #{tpu_custom_call.1} parent=75 // pred_check_branch
          %511 = sbr.rel (%p509) target = $region88
        $region87: #{tpu_custom_call.1} parent=75 // pred_region
          %512 = dma.done [#allocation9], 2048
        $region88: #{tpu_custom_call.1} parent=75 // pred_fallthru
          _
        // Predicated region
        $region89: #{tpu_custom_call.1} parent=75 // pred_check
          %p513 = pneg %p258
        $region90: #{tpu_custom_call.1} parent=75 // pred_check_branch
          %515 = sbr.rel (%p513) target = $region92
        $region91: #{tpu_custom_call.1} parent=75 // pred_region
          %516 = dma.done [#allocation9], 2048
        $region92: #{tpu_custom_call.1} parent=75 // pred_fallthru
          _
        %517 = sfence
        %p518 = scmp.lt.s32.totalorder %s33, 1
        %s519 = scalar_select %p518, %s33, 1
        %s520 = smul.addr %s519, 16
        %s521 = smul.addr %s520, 4
        %s522 = scalar_lea.vmem %s0, %s521
        %p523 = pneg %p54
        %p524 = pneg %p51
        %s525 = sand.u32 %s67, 1
        %s526 = scalar_lea.sflag [#allocation4], %s525
        %s527 = sand.u32 %s67, 1
        %s528 = smul.addr %s527, 64
        %s529 = scalar_lea.vmem [#allocation3], %s528
        %p530 = pneg %p80
        %p531 = pneg %p77
        %p532 = scmp.lt.s32.totalorder %s33, 1
        %s533 = scalar_select %p532, %s33, 1
        %s534 = smul.addr %s533, 16
        %s535 = smul.addr %s534, 8
        %s536 = scalar_lea.vmem %s2, %s535
        %p537 = pneg %p106
        %p538 = pneg %p103
        %p539 = scmp.lt.s32.totalorder %s33, 1
        %s540 = scalar_select %p539, %s33, 1
        %s541 = smul.addr %s540, 8
        %s542 = scalar_lea.vmem %s3, %s541
        %p543 = pneg %p132
        %p544 = pneg %p129
        %p545 = pneg %p153
        %p546 = pneg %p150
        %p547 = pneg %p174
        %p548 = pneg %p171
        %p549 = pneg %p195
        %p550 = pneg %p192
        %p551 = pneg %p216
        %p552 = pneg %p213
        %p553 = pneg %p237
        %p554 = pneg %p234
        %p555 = pneg %p258
        %p556 = pneg %p255
        %p557 = pneg %p279
        %p558 = pneg %p276
        %p559 = pneg %p300
        %p560 = pneg %p297
        %p561 = pneg %p321
        %p562 = pneg %p318
        %p563 = pneg %p342
        %p564 = pneg %p339
        %p565 = pneg %p368
        %p566 = pneg %p365
        %s567 = sand.u32 %s355, 1
        %s568 = scalar_lea.sflag [#allocation5], %s567
        %s569 = sand.u32 %s355, 1
        %s570 = smul.addr %s569, 8
        %s571 = scalar_lea.vmem [#allocation11], %s570
        %p572 = scmp.lt.s32.totalorder %s33, 1
        %s573 = scalar_select %p572, %s33, 1
        %s574 = smul.addr %s573, 16
        %s575 = smul.addr %s574, 4
        %s576 = scalar_lea.vmem %s0, %s575
        %p577 = scmp.lt.s32.totalorder %s33, 1
        %s578 = scalar_select %p577, %s33, 1
        %s579 = smul.addr %s578, 16
        %s580 = smul.addr %s579, 8
        %s581 = scalar_lea.vmem %s2, %s580
        %p582 = scmp.lt.s32.totalorder %s33, 1
        %s583 = scalar_select %p582, %s33, 1
        %s584 = smul.addr %s583, 8
        %s585 = scalar_lea.vmem %s3, %s584
        %v587 = vld [vmem:[%s500] sm:$0xf]
        %v588 = vld [vmem:[%s500 + $0x4] sm:$0xf]
        %v589 = vld [vmem:[%s500 + $0x8] sm:$0xf]
        %v590 = vld [vmem:[%s500 + $0xc] sm:$0xf]
        %v591 = vld [vmem:[%s500 + $0x10] sm:$0xf]
        %v592 = vld [vmem:[%s500 + $0x14] sm:$0xf]
        %v593 = vld [vmem:[%s500 + $0x18] sm:$0xf]
        %v594 = vld [vmem:[%s500 + $0x1c] sm:$0xf]
        %v595 = vld [vmem:[%s500 + $0x20] sm:$0xf]
        %v596 = vld [vmem:[%s500 + $0x24] sm:$0xf]
        %v597 = vld [vmem:[%s500 + $0x28] sm:$0xf]
        %v598 = vld [vmem:[%s500 + $0x2c] sm:$0xf]
        %v599 = vld [vmem:[%s500 + $0x30] sm:$0xf]
        %v600 = vld [vmem:[%s500 + $0x34] sm:$0xf]
        %v601 = vld [vmem:[%s500 + $0x38] sm:$0xf]
        %v602 = vld [vmem:[%s500 + $0x3c] sm:$0xf]
        %v603 = vld [vmem:[%s585] sm:$0xff]
        %v604 = vld [vmem:[%s581] sm:$0xff]
        %v605 = vld [vmem:[%s581 + $0x8] sm:$0xff]
        %v606 = vld [vmem:[%s581 + $0x10] sm:$0xff]
        %v607 = vld [vmem:[%s581 + $0x18] sm:$0xff]
        %v608 = vld [vmem:[%s581 + $0x20] sm:$0xff]
        %v609 = vld [vmem:[%s581 + $0x28] sm:$0xff]
        %v610 = vld [vmem:[%s581 + $0x30] sm:$0xff]
        %v611 = vld [vmem:[%s581 + $0x38] sm:$0xff]
        %v612 = vld [vmem:[%s581 + $0x40] sm:$0xff]
        %v613 = vld [vmem:[%s581 + $0x48] sm:$0xff]
        %v614 = vld [vmem:[%s581 + $0x50] sm:$0xff]
        %v615 = vld [vmem:[%s581 + $0x58] sm:$0xff]
        %v616 = vld [vmem:[%s581 + $0x60] sm:$0xff]
        %v617 = vld [vmem:[%s581 + $0x68] sm:$0xff]
        %v618 = vld [vmem:[%s581 + $0x70] sm:$0xff]
        %v619 = vld [vmem:[%s581 + $0x78] sm:$0xff]
        %v620 = vld [vmem:[%s576] sm:$0xf]
        %v621 = vld [vmem:[%s576 + $0x4] sm:$0xf]
        %v622 = vld [vmem:[%s576 + $0x8] sm:$0xf]
        %v623 = vld [vmem:[%s576 + $0xc] sm:$0xf]
        %v624 = vld [vmem:[%s576 + $0x10] sm:$0xf]
        %v625 = vld [vmem:[%s576 + $0x14] sm:$0xf]
        %v626 = vld [vmem:[%s576 + $0x18] sm:$0xf]
        %v627 = vld [vmem:[%s576 + $0x1c] sm:$0xf]
        %v628 = vld [vmem:[%s576 + $0x20] sm:$0xf]
        %v629 = vld [vmem:[%s576 + $0x24] sm:$0xf]
        %v630 = vld [vmem:[%s576 + $0x28] sm:$0xf]
        %v631 = vld [vmem:[%s576 + $0x2c] sm:$0xf]
        %v632 = vld [vmem:[%s576 + $0x30] sm:$0xf]
        %v633 = vld [vmem:[%s576 + $0x34] sm:$0xf]
        %v634 = vld [vmem:[%s576 + $0x38] sm:$0xf]
        %v635 = vld [vmem:[%s576 + $0x3c] sm:$0xf]
        %v636 = vld [vmem:[%s5] sm:$0xf]
        %v637 = vld [vmem:[%s6] sm:$0x1]
        %v639 = vlaneseq
        %v640 = vshrl.u32 %v639, 7
        %v641 = vsub.s32 0, %v640
        %v642 = vrot.slane %v637, %v641
        %v660 = vunpack.c.l.b16 %v620
        %v661 = vunpack.c.l.b16 %v621
        %v662 = vunpack.c.l.b16 %v622
        %v663 = vunpack.c.l.b16 %v623
        %v664 = vunpack.c.l.b16 %v624
        %v665 = vunpack.c.l.b16 %v625
        %v666 = vunpack.c.l.b16 %v626
        %v667 = vunpack.c.l.b16 %v627
        %v668 = vunpack.c.l.b16 %v628
        %v669 = vunpack.c.l.b16 %v629
        %v670 = vunpack.c.l.b16 %v630
        %v671 = vunpack.c.l.b16 %v631
        %v672 = vunpack.c.l.b16 %v632
        %v673 = vunpack.c.l.b16 %v633
        %v674 = vunpack.c.l.b16 %v634
        %v675 = vunpack.c.l.b16 %v635
        %v676 = vpack.c.b16 %v661, %v660
        %v677 = vpack.c.b16 %v663, %v662
        %v678 = vpack.c.b16 %v665, %v664
        %v679 = vpack.c.b16 %v667, %v666
        %v680 = vpack.c.b16 %v669, %v668
        %v681 = vpack.c.b16 %v671, %v670
        %v682 = vpack.c.b16 %v673, %v672
        %v683 = vpack.c.b16 %v675, %v674
        %vm684 = vcmask 64512
        %v686 = vsel %vm684, %v676, 0
        %v689 = vsel %vm684, %v677, 0
        %v692 = vsel %vm684, %v678, 0
        %v695 = vsel %vm684, %v679, 0
        %v698 = vsel %vm684, %v680, 0
        %v701 = vsel %vm684, %v681, 0
        %v704 = vsel %vm684, %v682, 0
        %v707 = vsel %vm684, %v683, 0
        %vm709 = vcmask 1043456
        %v711 = vsel %vm709, %v636, 0
        %713 = vmatprep.subr.bf16.mxu0 0
        %714 = vmatpush1.bf16.msra.mxu0 0
        %715 = vmatprep.subr.bf16.mxu0 0
        %716 = vmatpush1.bf16.msra.mxu0 0
        %717 = vmatprep.subr.bf16.mxu0 0
        %718 = vmatpush1.bf16.msra.mxu0 0
        %719 = vmatprep.subr.bf16.mxu0 0
        %720 = vmatpush1.bf16.msra.mxu0 0
        %721 = vmatprep.subr.bf16.mxu0 0
        %722 = vmatpush1.bf16.msra.mxu0 0
        %723 = vmatprep.subr.bf16.mxu0 0
        %724 = vmatpush1.bf16.msra.mxu0 0
        %725 = vmatprep.subr.bf16.mxu0 0
        %726 = vmatpush1.bf16.msra.mxu0 0
        %727 = vmatprep.subr.bf16.mxu0 0
        %728 = vmatpush1.bf16.msra.mxu0 %v711
        %729 = vmatprep.subr.bf16.mxu0 0
        %730 = vmatpush2.bf16.msra.mxu0 0
        %731 = vmatprep.subr.bf16.mxu0 0
        %732 = vmatpush2.bf16.msra.mxu0 0
        %733 = vmatprep.subr.bf16.mxu0 0
        %734 = vmatpush2.bf16.msra.mxu0 0
        %735 = vmatprep.subr.bf16.mxu0 0
        %736 = vmatpush2.bf16.msra.mxu0 0
        %737 = vmatprep.subr.bf16.mxu0 0
        %738 = vmatpush2.bf16.msra.mxu0 0
        %739 = vmatprep.subr.bf16.mxu0 0
        %740 = vmatpush2.bf16.msra.mxu0 0
        %741 = vmatprep.subr.bf16.mxu0 0
        %742 = vmatpush2.bf16.msra.mxu0 0
        %743 = vmatprep.subr.bf16.mxu0 0
        %744 = vmatpush2.bf16.msra.mxu0 0
        %745 = vmatprep.mubr.bf16.mxu0 0
        %746 = vmatmul.mubr.bf16.gmra.mxu0 %v686
        %v747 = vpop.f32.mrf.mxu0
        %v748 = vadd.f32 %v642, %v747
        %v749 = vpop.f32.mrf.mxu0
        %v750 = vpop.f32.mrf.mxu0
        %v751 = vadd.f32 %v642, %v750
        %v752 = vpop.f32.mrf.mxu0
        %753 = vmatprep.mubr.bf16.mxu0 0
        %754 = vmatmul.mubr.bf16.gmra.mxu0 %v689
        %v755 = vpop.f32.mrf.mxu0
        %v756 = vadd.f32 %v642, %v755
        %v757 = vpop.f32.mrf.mxu0
        %v758 = vpop.f32.mrf.mxu0
        %v759 = vadd.f32 %v642, %v758
        %v760 = vpop.f32.mrf.mxu0
        %761 = vmatprep.mubr.bf16.mxu0 0
        %762 = vmatmul.mubr.bf16.gmra.mxu0 %v692
        %v763 = vpop.f32.mrf.mxu0
        %v764 = vadd.f32 %v642, %v763
        %v765 = vpop.f32.mrf.mxu0
        %v766 = vpop.f32.mrf.mxu0
        %v767 = vadd.f32 %v642, %v766
        %v768 = vpop.f32.mrf.mxu0
        %769 = vmatprep.mubr.bf16.mxu0 0
        %770 = vmatmul.mubr.bf16.gmra.mxu0 %v695
        %v771 = vpop.f32.mrf.mxu0
        %v772 = vadd.f32 %v642, %v771
        %v773 = vpop.f32.mrf.mxu0
        %v774 = vpop.f32.mrf.mxu0
        %v775 = vadd.f32 %v642, %v774
        %v776 = vpop.f32.mrf.mxu0
        %777 = vmatprep.mubr.bf16.mxu0 0
        %778 = vmatmul.mubr.bf16.gmra.mxu0 %v698
        %v779 = vpop.f32.mrf.mxu0
        %v780 = vadd.f32 %v642, %v779
        %v781 = vpop.f32.mrf.mxu0
        %v782 = vpop.f32.mrf.mxu0
        %v783 = vadd.f32 %v642, %v782
        %v784 = vpop.f32.mrf.mxu0
        %785 = vmatprep.mubr.bf16.mxu0 0
        %786 = vmatmul.mubr.bf16.gmra.mxu0 %v701
        %v787 = vpop.f32.mrf.mxu0
        %v788 = vadd.f32 %v642, %v787
        %v789 = vpop.f32.mrf.mxu0
        %v790 = vpop.f32.mrf.mxu0
        %v791 = vadd.f32 %v642, %v790
        %v792 = vpop.f32.mrf.mxu0
        %793 = vmatprep.mubr.bf16.mxu0 0
        %794 = vmatmul.mubr.bf16.gmra.mxu0 %v704
        %v795 = vpop.f32.mrf.mxu0
        %v796 = vadd.f32 %v642, %v795
        %v797 = vpop.f32.mrf.mxu0
        %v798 = vpop.f32.mrf.mxu0
        %v799 = vadd.f32 %v642, %v798
        %v800 = vpop.f32.mrf.mxu0
        %801 = vmatprep.mubr.bf16.mxu0 0
        %802 = vmatmul.mubr.bf16.gmra.mxu0 %v707
        %v803 = vpop.f32.mrf.mxu0
        %v804 = vadd.f32 %v642, %v803
        %v805 = vpop.f32.mrf.mxu0
        %v806 = vpop.f32.mrf.mxu0
        %v807 = vadd.f32 %v642, %v806
        %v808 = vpop.f32.mrf.mxu0
        %809 = vdwg.mxu0
        %810 = vmatprep.subr.mxu0 0.0
        %811 = vmatpush1.msra.mxu0 %v807
        %812 = vmatprep.subr.mxu0 0.0
        %813 = vmatpush1.msra.mxu0 %v804
        %814 = vmatprep.subr.mxu0 0.0
        %815 = vmatpush1.msra.mxu0 %v799
        %816 = vmatprep.subr.mxu0 0.0
        %817 = vmatpush1.msra.mxu0 %v796
        %818 = vmatprep.subr.mxu0 0.0
        %819 = vmatpush1.msra.mxu0 %v791
        %820 = vmatprep.subr.mxu0 0.0
        %821 = vmatpush1.msra.mxu0 %v788
        %822 = vmatprep.subr.mxu0 0.0
        %823 = vmatpush1.msra.mxu0 %v783
        %824 = vmatprep.subr.mxu0 0.0
        %825 = vmatpush1.msra.mxu0 %v780
        %826 = vmatprep.subr.mxu0 0.0
        %827 = vmatpush1.msra.mxu0 %v775
        %828 = vmatprep.subr.mxu0 0.0
        %829 = vmatpush1.msra.mxu0 %v772
        %830 = vmatprep.subr.mxu0 0.0
        %831 = vmatpush1.msra.mxu0 %v767
        %832 = vmatprep.subr.mxu0 0.0
        %833 = vmatpush1.msra.mxu0 %v764
        %834 = vmatprep.subr.mxu0 0.0
        %835 = vmatpush1.msra.mxu0 %v759
        %836 = vmatprep.subr.mxu0 0.0
        %837 = vmatpush1.msra.mxu0 %v756
        %838 = vmatprep.subr.mxu0 0.0
        %839 = vmatpush1.msra.mxu0 %v751
        %840 = vmatprep.subr.mxu0 0.0
        %841 = vmatpush1.msra.mxu0 %v748
        %842 = vmatprep.subr.mxu0 0.0
        %843 = vmatpush2.msra.mxu0 0.0
        %844 = vmatprep.subr.mxu0 0.0
        %845 = vmatpush2.msra.mxu0 0.0
        %846 = vmatprep.subr.mxu0 0.0
        %847 = vmatpush2.msra.mxu0 0.0
        %848 = vmatprep.subr.mxu0 0.0
        %849 = vmatpush2.msra.mxu0 0.0
        %850 = vmatprep.subr.mxu0 0.0
        %851 = vmatpush2.msra.mxu0 0.0
        %852 = vmatprep.subr.mxu0 0.0
        %853 = vmatpush2.msra.mxu0 0.0
        %854 = vmatprep.subr.mxu0 0.0
        %855 = vmatpush2.msra.mxu0 0.0
        %856 = vmatprep.subr.mxu0 0.0
        %857 = vmatpush2.msra.mxu0 0.0
        %858 = vmatprep.subr.mxu0 0.0
        %859 = vmatpush2.msra.mxu0 0.0
        %860 = vmatprep.subr.mxu0 0.0
        %861 = vmatpush2.msra.mxu0 0.0
        %862 = vmatprep.subr.mxu0 0.0
        %863 = vmatpush2.msra.mxu0 0.0
        %864 = vmatprep.subr.mxu0 0.0
        %865 = vmatpush2.msra.mxu0 0.0
        %866 = vmatprep.subr.mxu0 0.0
        %867 = vmatpush2.msra.mxu0 0.0
        %868 = vmatprep.subr.mxu0 0.0
        %869 = vmatpush2.msra.mxu0 0.0
        %870 = vmatprep.subr.mxu0 0.0
        %871 = vmatpush2.msra.mxu0 0.0
        %872 = vmatprep.subr.mxu0 0.0
        %873 = vmatpush2.msra.mxu0 0.0
        %874 = vmatprep.mubr.f32.mxu0 0.0
        %875 = vmatmul.mubr.f32.gmra.mxu0 %v603
        %v876 = vpop.f32.mrf.mxu0
        %v877 = vadd.f32 0.0, %v876
        %v878 = vpop.f32.mrf.mxu0
        %879 = vdwg.mxu0
        %880 = vst [vmem:[#allocation2] sm:$0xff] %v877
        %v881 = vpack.c.bf16 %v751, %v748
        %v882 = vpack.c.bf16 %v759, %v756
        %v883 = vpack.c.bf16 %v767, %v764
        %v884 = vpack.c.bf16 %v775, %v772
        %v885 = vpack.c.bf16 %v783, %v780
        %v886 = vpack.c.bf16 %v791, %v788
        %v887 = vpack.c.bf16 %v799, %v796
        %v888 = vpack.c.bf16 %v807, %v804
        %v905 = vunpack.c.l.b16 %v587
        %v906 = vunpack.c.l.b16 %v588
        %v907 = vunpack.c.l.b16 %v589
        %v908 = vunpack.c.l.b16 %v590
        %v909 = vunpack.c.l.b16 %v591
        %v910 = vunpack.c.l.b16 %v592
        %v911 = vunpack.c.l.b16 %v593
        %v912 = vunpack.c.l.b16 %v594
        %v913 = vunpack.c.l.b16 %v595
        %v914 = vunpack.c.l.b16 %v596
        %v915 = vunpack.c.l.b16 %v597
        %v916 = vunpack.c.l.b16 %v598
        %v917 = vunpack.c.l.b16 %v599
        %v918 = vunpack.c.l.b16 %v600
        %v919 = vunpack.c.l.b16 %v601
        %v920 = vunpack.c.l.b16 %v602
        %v921 = vpack.c.b16 %v906, %v905
        %v922 = vpack.c.b16 %v908, %v907
        %v923 = vpack.c.b16 %v910, %v909
        %v924 = vpack.c.b16 %v912, %v911
        %v925 = vpack.c.b16 %v914, %v913
        %v926 = vpack.c.b16 %v916, %v915
        %v927 = vpack.c.b16 %v918, %v917
        %v928 = vpack.c.b16 %v920, %v919
        %937 = vmatprep.subr.bf16.mxu0 0
        %938 = vmatpush1.bf16.msra.mxu0 %v888
        %939 = vmatprep.subr.bf16.mxu0 0
        %940 = vmatpush1.bf16.msra.mxu0 %v887
        %941 = vmatprep.subr.bf16.mxu0 0
        %942 = vmatpush1.bf16.msra.mxu0 %v886
        %943 = vmatprep.subr.bf16.mxu0 0
        %944 = vmatpush1.bf16.msra.mxu0 %v885
        %945 = vmatprep.subr.bf16.mxu0 0
        %946 = vmatpush1.bf16.msra.mxu0 %v884
        %947 = vmatprep.subr.bf16.mxu0 0
        %948 = vmatpush1.bf16.msra.mxu0 %v883
        %949 = vmatprep.subr.bf16.mxu0 0
        %950 = vmatpush1.bf16.msra.mxu0 %v882
        %951 = vmatprep.subr.bf16.mxu0 0
        %952 = vmatpush1.bf16.msra.mxu0 %v881
        %953 = vmatprep.subr.bf16.mxu0 0
        %954 = vmatpush2.bf16.msra.mxu0 0
        %955 = vmatprep.subr.bf16.mxu0 0
        %956 = vmatpush2.bf16.msra.mxu0 0
        %957 = vmatprep.subr.bf16.mxu0 0
        %958 = vmatpush2.bf16.msra.mxu0 0
        %959 = vmatprep.subr.bf16.mxu0 0
        %960 = vmatpush2.bf16.msra.mxu0 0
        %961 = vmatprep.subr.bf16.mxu0 0
        %962 = vmatpush2.bf16.msra.mxu0 0
        %963 = vmatprep.subr.bf16.mxu0 0
        %964 = vmatpush2.bf16.msra.mxu0 0
        %965 = vmatprep.subr.bf16.mxu0 0
        %966 = vmatpush2.bf16.msra.mxu0 0
        %967 = vmatprep.subr.bf16.mxu0 0
        %968 = vmatpush2.bf16.msra.mxu0 0
        %969 = vmatprep.mubr.bf16.mxu0 0
        %970 = vmatmul.mubr.bf16.gmra.mxu0 %v921
        %v971 = vpop.f32.mrf.mxu0
        %v972 = vadd.f32 0.0, %v971
        %v973 = vpop.f32.mrf.mxu0
        %v974 = vpop.f32.mrf.mxu0
        %v975 = vadd.f32 0.0, %v974
        %v976 = vpop.f32.mrf.mxu0
        %977 = vmatprep.mubr.bf16.mxu0 0
        %978 = vmatmul.mubr.bf16.gmra.mxu0 %v922
        %v979 = vpop.f32.mrf.mxu0
        %v980 = vadd.f32 0.0, %v979
        %v981 = vpop.f32.mrf.mxu0
        %v982 = vpop.f32.mrf.mxu0
        %v983 = vadd.f32 0.0, %v982
        %v984 = vpop.f32.mrf.mxu0
        %985 = vmatprep.mubr.bf16.mxu0 0
        %986 = vmatmul.mubr.bf16.gmra.mxu0 %v923
        %v987 = vpop.f32.mrf.mxu0
        %v988 = vadd.f32 0.0, %v987
        %v989 = vpop.f32.mrf.mxu0
        %v990 = vpop.f32.mrf.mxu0
        %v991 = vadd.f32 0.0, %v990
        %v992 = vpop.f32.mrf.mxu0
        %993 = vmatprep.mubr.bf16.mxu0 0
        %994 = vmatmul.mubr.bf16.gmra.mxu0 %v924
        %v995 = vpop.f32.mrf.mxu0
        %v996 = vadd.f32 0.0, %v995
        %v997 = vpop.f32.mrf.mxu0
        %v998 = vpop.f32.mrf.mxu0
        %v999 = vadd.f32 0.0, %v998
        %v1000 = vpop.f32.mrf.mxu0
        %1001 = vmatprep.mubr.bf16.mxu0 0
        %1002 = vmatmul.mubr.bf16.gmra.mxu0 %v925
        %v1003 = vpop.f32.mrf.mxu0
        %v1004 = vadd.f32 0.0, %v1003
        %v1005 = vpop.f32.mrf.mxu0
        %v1006 = vpop.f32.mrf.mxu0
        %v1007 = vadd.f32 0.0, %v1006
        %v1008 = vpop.f32.mrf.mxu0
        %1009 = vmatprep.mubr.bf16.mxu0 0
        %1010 = vmatmul.mubr.bf16.gmra.mxu0 %v926
        %v1011 = vpop.f32.mrf.mxu0
        %v1012 = vadd.f32 0.0, %v1011
        %v1013 = vpop.f32.mrf.mxu0
        %v1014 = vpop.f32.mrf.mxu0
        %v1015 = vadd.f32 0.0, %v1014
        %v1016 = vpop.f32.mrf.mxu0
        %1017 = vmatprep.mubr.bf16.mxu0 0
        %1018 = vmatmul.mubr.bf16.gmra.mxu0 %v927
        %v1019 = vpop.f32.mrf.mxu0
        %v1020 = vadd.f32 0.0, %v1019
        %v1021 = vpop.f32.mrf.mxu0
        %v1022 = vpop.f32.mrf.mxu0
        %v1023 = vadd.f32 0.0, %v1022
        %v1024 = vpop.f32.mrf.mxu0
        %1025 = vmatprep.mubr.bf16.mxu0 0
        %1026 = vmatmul.mubr.bf16.gmra.mxu0 %v928
        %v1027 = vpop.f32.mrf.mxu0
        %v1028 = vadd.f32 0.0, %v1027
        %v1029 = vpop.f32.mrf.mxu0
        %v1030 = vpop.f32.mrf.mxu0
        %v1031 = vadd.f32 0.0, %v1030
        %v1032 = vpop.f32.mrf.mxu0
        %1033 = vdwg.mxu0
        %s1034 = sld [smem:[#allocation7]]
        %v1035 = vstv %s1034
        %v1036 = vmul.f32 %v1035, %v748
        %v1037 = vmul.f32 %v1035, %v751
        %v1038 = vmul.f32 %v1035, %v756
        %v1039 = vmul.f32 %v1035, %v759
        %v1040 = vmul.f32 %v1035, %v764
        %v1041 = vmul.f32 %v1035, %v767
        %v1042 = vmul.f32 %v1035, %v772
        %v1043 = vmul.f32 %v1035, %v775
        %v1044 = vmul.f32 %v1035, %v780
        %v1045 = vmul.f32 %v1035, %v783
        %v1046 = vmul.f32 %v1035, %v788
        %v1047 = vmul.f32 %v1035, %v791
        %v1048 = vmul.f32 %v1035, %v796
        %v1049 = vmul.f32 %v1035, %v799
        %v1050 = vmul.f32 %v1035, %v804
        %v1051 = vmul.f32 %v1035, %v807
        %v1052 = vadd.f32 %v1036, %v972
        %v1053 = vadd.f32 %v1037, %v975
        %v1054 = vadd.f32 %v1038, %v980
        %v1055 = vadd.f32 %v1039, %v983
        %v1056 = vadd.f32 %v1040, %v988
        %v1057 = vadd.f32 %v1041, %v991
        %v1058 = vadd.f32 %v1042, %v996
        %v1059 = vadd.f32 %v1043, %v999
        %v1060 = vadd.f32 %v1044, %v1004
        %v1061 = vadd.f32 %v1045, %v1007
        %v1062 = vadd.f32 %v1046, %v1012
        %v1063 = vadd.f32 %v1047, %v1015
        %v1064 = vadd.f32 %v1048, %v1020
        %v1065 = vadd.f32 %v1049, %v1023
        %v1066 = vadd.f32 %v1050, %v1028
        %v1067 = vadd.f32 %v1051, %v1031
        %v1068 = vpack.c.bf16 %v1053, %v1052
        %v1069 = vpack.c.bf16 %v1055, %v1054
        %v1070 = vpack.c.bf16 %v1057, %v1056
        %v1071 = vpack.c.bf16 %v1059, %v1058
        %v1072 = vpack.c.bf16 %v1061, %v1060
        %v1073 = vpack.c.bf16 %v1063, %v1062
        %v1074 = vpack.c.bf16 %v1065, %v1064
        %v1075 = vpack.c.bf16 %v1067, %v1066
        %v1076 = vld [vmem:[#allocation8] sm:$0xf]
        %v1077 = vld [vmem:[#allocation8 + $0x4] sm:$0xf]
        %v1078 = vld [vmem:[#allocation8 + $0x8] sm:$0xf]
        %v1079 = vld [vmem:[#allocation8 + $0xc] sm:$0xf]
        %v1080 = vld [vmem:[#allocation8 + $0x10] sm:$0xf]
        %v1081 = vld [vmem:[#allocation8 + $0x14] sm:$0xf]
        %v1082 = vld [vmem:[#allocation8 + $0x18] sm:$0xf]
        %v1083 = vld [vmem:[#allocation8 + $0x1c] sm:$0xf]
        %v1084 = vld [vmem:[#allocation8 + $0x20] sm:$0xf]
        %v1085 = vld [vmem:[#allocation8 + $0x24] sm:$0xf]
        %v1086 = vld [vmem:[#allocation8 + $0x28] sm:$0xf]
        %v1087 = vld [vmem:[#allocation8 + $0x2c] sm:$0xf]
        %v1088 = vld [vmem:[#allocation8 + $0x30] sm:$0xf]
        %v1089 = vld [vmem:[#allocation8 + $0x34] sm:$0xf]
        %v1090 = vld [vmem:[#allocation8 + $0x38] sm:$0xf]
        %v1091 = vld [vmem:[#allocation8 + $0x3c] sm:$0xf]
        %v1092 = vld [vmem:[%s8] sm:$0x1]
        %v1094 = vlaneseq
        %v1095 = vshrl.u32 %v1094, 7
        %v1096 = vsub.s32 0, %v1095
        %v1097 = vrot.slane %v1092, %v1096
        %v1115 = vunpack.c.l.b16 %v1076
        %v1116 = vunpack.c.l.b16 %v1077
        %v1117 = vunpack.c.l.b16 %v1078
        %v1118 = vunpack.c.l.b16 %v1079
        %v1119 = vunpack.c.l.b16 %v1080
        %v1120 = vunpack.c.l.b16 %v1081
        %v1121 = vunpack.c.l.b16 %v1082
        %v1122 = vunpack.c.l.b16 %v1083
        %v1123 = vunpack.c.l.b16 %v1084
        %v1124 = vunpack.c.l.b16 %v1085
        %v1125 = vunpack.c.l.b16 %v1086
        %v1126 = vunpack.c.l.b16 %v1087
        %v1127 = vunpack.c.l.b16 %v1088
        %v1128 = vunpack.c.l.b16 %v1089
        %v1129 = vunpack.c.l.b16 %v1090
        %v1130 = vunpack.c.l.b16 %v1091
        %v1131 = vpack.c.b16 %v1116, %v1115
        %v1132 = vpack.c.b16 %v1118, %v1117
        %v1133 = vpack.c.b16 %v1120, %v1119
        %v1134 = vpack.c.b16 %v1122, %v1121
        %v1135 = vpack.c.b16 %v1124, %v1123
        %v1136 = vpack.c.b16 %v1126, %v1125
        %v1137 = vpack.c.b16 %v1128, %v1127
        %v1138 = vpack.c.b16 %v1130, %v1129
        %1147 = vmatprep.subr.bf16.mxu0 0
        %1148 = vmatpush1.bf16.msra.mxu0 %v1138
        %1149 = vmatprep.subr.bf16.mxu0 0
        %1150 = vmatpush1.bf16.msra.mxu0 %v1137
        %1151 = vmatprep.subr.bf16.mxu0 0
        %1152 = vmatpush1.bf16.msra.mxu0 %v1136
        %1153 = vmatprep.subr.bf16.mxu0 0
        %1154 = vmatpush1.bf16.msra.mxu0 %v1135
        %1155 = vmatprep.subr.bf16.mxu0 0
        %1156 = vmatpush1.bf16.msra.mxu0 %v1134
        %1157 = vmatprep.subr.bf16.mxu0 0
        %1158 = vmatpush1.bf16.msra.mxu0 %v1133
        %1159 = vmatprep.subr.bf16.mxu0 0
        %1160 = vmatpush1.bf16.msra.mxu0 %v1132
        %1161 = vmatprep.subr.bf16.mxu0 0
        %1162 = vmatpush1.bf16.msra.mxu0 %v1131
        %1163 = vmatprep.subr.bf16.mxu0 0
        %1164 = vmatpush2.bf16.msra.mxu0 0
        %1165 = vmatprep.subr.bf16.mxu0 0
        %1166 = vmatpush2.bf16.msra.mxu0 0
        %1167 = vmatprep.subr.bf16.mxu0 0
        %1168 = vmatpush2.bf16.msra.mxu0 0
        %1169 = vmatprep.subr.bf16.mxu0 0
        %1170 = vmatpush2.bf16.msra.mxu0 0
        %1171 = vmatprep.subr.bf16.mxu0 0
        %1172 = vmatpush2.bf16.msra.mxu0 0
        %1173 = vmatprep.subr.bf16.mxu0 0
        %1174 = vmatpush2.bf16.msra.mxu0 0
        %1175 = vmatprep.subr.bf16.mxu0 0
        %1176 = vmatpush2.bf16.msra.mxu0 0
        %1177 = vmatprep.subr.bf16.mxu0 0
        %1178 = vmatpush2.bf16.msra.mxu0 0
        %1179 = vmatprep.mubr.bf16.mxu0 0
        %1180 = vmatmul.mubr.bf16.gmra.mxu0 %v1068
        %v1181 = vpop.f32.mrf.mxu0
        %v1182 = vadd.f32 %v1097, %v1181
        %v1183 = vpop.f32.mrf.mxu0
        %v1184 = vpop.f32.mrf.mxu0
        %v1185 = vadd.f32 %v1097, %v1184
        %v1186 = vpop.f32.mrf.mxu0
        %1187 = vmatprep.mubr.bf16.mxu0 0
        %1188 = vmatmul.mubr.bf16.gmra.mxu0 %v1069
        %v1189 = vpop.f32.mrf.mxu0
        %v1190 = vadd.f32 %v1097, %v1189
        %v1191 = vpop.f32.mrf.mxu0
        %v1192 = vpop.f32.mrf.mxu0
        %v1193 = vadd.f32 %v1097, %v1192
        %v1194 = vpop.f32.mrf.mxu0
        %1195 = vmatprep.mubr.bf16.mxu0 0
        %1196 = vmatmul.mubr.bf16.gmra.mxu0 %v1070
        %v1197 = vpop.f32.mrf.mxu0
        %v1198 = vadd.f32 %v1097, %v1197
        %v1199 = vpop.f32.mrf.mxu0
        %v1200 = vpop.f32.mrf.mxu0
        %v1201 = vadd.f32 %v1097, %v1200
        %v1202 = vpop.f32.mrf.mxu0
        %1203 = vmatprep.mubr.bf16.mxu0 0
        %1204 = vmatmul.mubr.bf16.gmra.mxu0 %v1071
        %v1205 = vpop.f32.mrf.mxu0
        %v1206 = vadd.f32 %v1097, %v1205
        %v1207 = vpop.f32.mrf.mxu0
        %v1208 = vpop.f32.mrf.mxu0
        %v1209 = vadd.f32 %v1097, %v1208
        %v1210 = vpop.f32.mrf.mxu0
        %1211 = vmatprep.mubr.bf16.mxu0 0
        %1212 = vmatmul.mubr.bf16.gmra.mxu0 %v1072
        %v1213 = vpop.f32.mrf.mxu0
        %v1214 = vadd.f32 %v1097, %v1213
        %v1215 = vpop.f32.mrf.mxu0
        %v1216 = vpop.f32.mrf.mxu0
        %v1217 = vadd.f32 %v1097, %v1216
        %v1218 = vpop.f32.mrf.mxu0
        %1219 = vmatprep.mubr.bf16.mxu0 0
        %1220 = vmatmul.mubr.bf16.gmra.mxu0 %v1073
        %v1221 = vpop.f32.mrf.mxu0
        %v1222 = vadd.f32 %v1097, %v1221
        %v1223 = vpop.f32.mrf.mxu0
        %v1224 = vpop.f32.mrf.mxu0
        %v1225 = vadd.f32 %v1097, %v1224
        %v1226 = vpop.f32.mrf.mxu0
        %1227 = vmatprep.mubr.bf16.mxu0 0
        %1228 = vmatmul.mubr.bf16.gmra.mxu0 %v1074
        %v1229 = vpop.f32.mrf.mxu0
        %v1230 = vadd.f32 %v1097, %v1229
        %v1231 = vpop.f32.mrf.mxu0
        %v1232 = vpop.f32.mrf.mxu0
        %v1233 = vadd.f32 %v1097, %v1232
        %v1234 = vpop.f32.mrf.mxu0
        %1235 = vmatprep.mubr.bf16.mxu0 0
        %1236 = vmatmul.mubr.bf16.gmra.mxu0 %v1075
        %v1237 = vpop.f32.mrf.mxu0
        %v1238 = vadd.f32 %v1097, %v1237
        %v1239 = vpop.f32.mrf.mxu0
        %v1240 = vpop.f32.mrf.mxu0
        %v1241 = vadd.f32 %v1097, %v1240
        %v1242 = vpop.f32.mrf.mxu0
        %1243 = vdwg.mxu0
        %v1244 = vmax.f32 %v1182, 0.0
        %v1245 = vmax.f32 %v1185, 0.0
        %v1246 = vmax.f32 %v1190, 0.0
        %v1247 = vmax.f32 %v1193, 0.0
        %v1248 = vmax.f32 %v1198, 0.0
        %v1249 = vmax.f32 %v1201, 0.0
        %v1250 = vmax.f32 %v1206, 0.0
        %v1251 = vmax.f32 %v1209, 0.0
        %v1252 = vmax.f32 %v1214, 0.0
        %v1253 = vmax.f32 %v1217, 0.0
        %v1254 = vmax.f32 %v1222, 0.0
        %v1255 = vmax.f32 %v1225, 0.0
        %v1256 = vmax.f32 %v1230, 0.0
        %v1257 = vmax.f32 %v1233, 0.0
        %v1258 = vmax.f32 %v1238, 0.0
        %v1259 = vmax.f32 %v1241, 0.0
        %v1260 = vpack.c.bf16 %v1245, %v1244
        %v1261 = vpack.c.bf16 %v1247, %v1246
        %v1262 = vpack.c.bf16 %v1249, %v1248
        %v1263 = vpack.c.bf16 %v1251, %v1250
        %v1264 = vpack.c.bf16 %v1253, %v1252
        %v1265 = vpack.c.bf16 %v1255, %v1254
        %v1266 = vpack.c.bf16 %v1257, %v1256
        %v1267 = vpack.c.bf16 %v1259, %v1258
        %v1268 = vld [vmem:[#allocation10] sm:$0xf]
        %v1269 = vld [vmem:[#allocation10 + $0x4] sm:$0xf]
        %v1270 = vld [vmem:[#allocation10 + $0x8] sm:$0xf]
        %v1271 = vld [vmem:[#allocation10 + $0xc] sm:$0xf]
        %v1272 = vld [vmem:[#allocation10 + $0x10] sm:$0xf]
        %v1273 = vld [vmem:[#allocation10 + $0x14] sm:$0xf]
        %v1274 = vld [vmem:[#allocation10 + $0x18] sm:$0xf]
        %v1275 = vld [vmem:[#allocation10 + $0x1c] sm:$0xf]
        %v1276 = vld [vmem:[#allocation10 + $0x20] sm:$0xf]
        %v1277 = vld [vmem:[#allocation10 + $0x24] sm:$0xf]
        %v1278 = vld [vmem:[#allocation10 + $0x28] sm:$0xf]
        %v1279 = vld [vmem:[#allocation10 + $0x2c] sm:$0xf]
        %v1280 = vld [vmem:[#allocation10 + $0x30] sm:$0xf]
        %v1281 = vld [vmem:[#allocation10 + $0x34] sm:$0xf]
        %v1282 = vld [vmem:[#allocation10 + $0x38] sm:$0xf]
        %v1283 = vld [vmem:[#allocation10 + $0x3c] sm:$0xf]
        %v1284 = vld [vmem:[%s10] sm:$0x1]
        %v1286 = vlaneseq
        %v1287 = vshrl.u32 %v1286, 7
        %v1288 = vsub.s32 0, %v1287
        %v1289 = vrot.slane %v1284, %v1288
        %v1307 = vunpack.c.l.b16 %v1268
        %v1308 = vunpack.c.l.b16 %v1269
        %v1309 = vunpack.c.l.b16 %v1270
        %v1310 = vunpack.c.l.b16 %v1271
        %v1311 = vunpack.c.l.b16 %v1272
        %v1312 = vunpack.c.l.b16 %v1273
        %v1313 = vunpack.c.l.b16 %v1274
        %v1314 = vunpack.c.l.b16 %v1275
        %v1315 = vunpack.c.l.b16 %v1276
        %v1316 = vunpack.c.l.b16 %v1277
        %v1317 = vunpack.c.l.b16 %v1278
        %v1318 = vunpack.c.l.b16 %v1279
        %v1319 = vunpack.c.l.b16 %v1280
        %v1320 = vunpack.c.l.b16 %v1281
        %v1321 = vunpack.c.l.b16 %v1282
        %v1322 = vunpack.c.l.b16 %v1283
        %v1323 = vpack.c.b16 %v1308, %v1307
        %v1324 = vpack.c.b16 %v1310, %v1309
        %v1325 = vpack.c.b16 %v1312, %v1311
        %v1326 = vpack.c.b16 %v1314, %v1313
        %v1327 = vpack.c.b16 %v1316, %v1315
        %v1328 = vpack.c.b16 %v1318, %v1317
        %v1329 = vpack.c.b16 %v1320, %v1319
        %v1330 = vpack.c.b16 %v1322, %v1321
        %1339 = vmatprep.subr.bf16.mxu0 0
        %1340 = vmatpush1.bf16.msra.mxu0 %v1330
        %1341 = vmatprep.subr.bf16.mxu0 0
        %1342 = vmatpush1.bf16.msra.mxu0 %v1329
        %1343 = vmatprep.subr.bf16.mxu0 0
        %1344 = vmatpush1.bf16.msra.mxu0 %v1328
        %1345 = vmatprep.subr.bf16.mxu0 0
        %1346 = vmatpush1.bf16.msra.mxu0 %v1327
        %1347 = vmatprep.subr.bf16.mxu0 0
        %1348 = vmatpush1.bf16.msra.mxu0 %v1326
        %1349 = vmatprep.subr.bf16.mxu0 0
        %1350 = vmatpush1.bf16.msra.mxu0 %v1325
        %1351 = vmatprep.subr.bf16.mxu0 0
        %1352 = vmatpush1.bf16.msra.mxu0 %v1324
        %1353 = vmatprep.subr.bf16.mxu0 0
        %1354 = vmatpush1.bf16.msra.mxu0 %v1323
        %1355 = vmatprep.subr.bf16.mxu0 0
        %1356 = vmatpush2.bf16.msra.mxu0 0
        %1357 = vmatprep.subr.bf16.mxu0 0
        %1358 = vmatpush2.bf16.msra.mxu0 0
        %1359 = vmatprep.subr.bf16.mxu0 0
        %1360 = vmatpush2.bf16.msra.mxu0 0
        %1361 = vmatprep.subr.bf16.mxu0 0
        %1362 = vmatpush2.bf16.msra.mxu0 0
        %1363 = vmatprep.subr.bf16.mxu0 0
        %1364 = vmatpush2.bf16.msra.mxu0 0
        %1365 = vmatprep.subr.bf16.mxu0 0
        %1366 = vmatpush2.bf16.msra.mxu0 0
        %1367 = vmatprep.subr.bf16.mxu0 0
        %1368 = vmatpush2.bf16.msra.mxu0 0
        %1369 = vmatprep.subr.bf16.mxu0 0
        %1370 = vmatpush2.bf16.msra.mxu0 0
        %1371 = vmatprep.mubr.bf16.mxu0 0
        %1372 = vmatmul.mubr.bf16.gmra.mxu0 %v1260
        %v1373 = vpop.f32.mrf.mxu0
        %v1374 = vadd.f32 %v1289, %v1373
        %v1375 = vpop.f32.mrf.mxu0
        %v1376 = vpop.f32.mrf.mxu0
        %v1377 = vadd.f32 %v1289, %v1376
        %v1378 = vpop.f32.mrf.mxu0
        %1379 = vmatprep.mubr.bf16.mxu0 0
        %1380 = vmatmul.mubr.bf16.gmra.mxu0 %v1261
        %v1381 = vpop.f32.mrf.mxu0
        %v1382 = vadd.f32 %v1289, %v1381
        %v1383 = vpop.f32.mrf.mxu0
        %v1384 = vpop.f32.mrf.mxu0
        %v1385 = vadd.f32 %v1289, %v1384
        %v1386 = vpop.f32.mrf.mxu0
        %1387 = vmatprep.mubr.bf16.mxu0 0
        %1388 = vmatmul.mubr.bf16.gmra.mxu0 %v1262
        %v1389 = vpop.f32.mrf.mxu0
        %v1390 = vadd.f32 %v1289, %v1389
        %v1391 = vpop.f32.mrf.mxu0
        %v1392 = vpop.f32.mrf.mxu0
        %v1393 = vadd.f32 %v1289, %v1392
        %v1394 = vpop.f32.mrf.mxu0
        %1395 = vmatprep.mubr.bf16.mxu0 0
        %1396 = vmatmul.mubr.bf16.gmra.mxu0 %v1263
        %v1397 = vpop.f32.mrf.mxu0
        %v1398 = vadd.f32 %v1289, %v1397
        %v1399 = vpop.f32.mrf.mxu0
        %v1400 = vpop.f32.mrf.mxu0
        %v1401 = vadd.f32 %v1289, %v1400
        %v1402 = vpop.f32.mrf.mxu0
        %1403 = vmatprep.mubr.bf16.mxu0 0
        %1404 = vmatmul.mubr.bf16.gmra.mxu0 %v1264
        %v1405 = vpop.f32.mrf.mxu0
        %v1406 = vadd.f32 %v1289, %v1405
        %v1407 = vpop.f32.mrf.mxu0
        %v1408 = vpop.f32.mrf.mxu0
        %v1409 = vadd.f32 %v1289, %v1408
        %v1410 = vpop.f32.mrf.mxu0
        %1411 = vmatprep.mubr.bf16.mxu0 0
        %1412 = vmatmul.mubr.bf16.gmra.mxu0 %v1265
        %v1413 = vpop.f32.mrf.mxu0
        %v1414 = vadd.f32 %v1289, %v1413
        %v1415 = vpop.f32.mrf.mxu0
        %v1416 = vpop.f32.mrf.mxu0
        %v1417 = vadd.f32 %v1289, %v1416
        %v1418 = vpop.f32.mrf.mxu0
        %1419 = vmatprep.mubr.bf16.mxu0 0
        %1420 = vmatmul.mubr.bf16.gmra.mxu0 %v1266
        %v1421 = vpop.f32.mrf.mxu0
        %v1422 = vadd.f32 %v1289, %v1421
        %v1423 = vpop.f32.mrf.mxu0
        %v1424 = vpop.f32.mrf.mxu0
        %v1425 = vadd.f32 %v1289, %v1424
        %v1426 = vpop.f32.mrf.mxu0
        %1427 = vmatprep.mubr.bf16.mxu0 0
        %1428 = vmatmul.mubr.bf16.gmra.mxu0 %v1267
        %v1429 = vpop.f32.mrf.mxu0
        %v1430 = vadd.f32 %v1289, %v1429
        %v1431 = vpop.f32.mrf.mxu0
        %v1432 = vpop.f32.mrf.mxu0
        %v1433 = vadd.f32 %v1289, %v1432
        %v1434 = vpop.f32.mrf.mxu0
        %1435 = vdwg.mxu0
        %v1436 = vmax.f32 %v1374, 0.0
        %v1437 = vmax.f32 %v1377, 0.0
        %v1438 = vmax.f32 %v1382, 0.0
        %v1439 = vmax.f32 %v1385, 0.0
        %v1440 = vmax.f32 %v1390, 0.0
        %v1441 = vmax.f32 %v1393, 0.0
        %v1442 = vmax.f32 %v1398, 0.0
        %v1443 = vmax.f32 %v1401, 0.0
        %v1444 = vmax.f32 %v1406, 0.0
        %v1445 = vmax.f32 %v1409, 0.0
        %v1446 = vmax.f32 %v1414, 0.0
        %v1447 = vmax.f32 %v1417, 0.0
        %v1448 = vmax.f32 %v1422, 0.0
        %v1449 = vmax.f32 %v1425, 0.0
        %v1450 = vmax.f32 %v1430, 0.0
        %v1451 = vmax.f32 %v1433, 0.0
        %v1452 = vld [vmem:[%s11] sm:$0x3]
        %1454 = vset.pattern.permute.xlu0 0
        %1455 = vperm.xlu0 %1454, %v604
        %v1456 = vpop.permute.xlu0 %1455
        %1459 = vset.pattern.permute.xlu0 0
        %1460 = vperm.xlu0 %1459, %v605
        %v1461 = vpop.permute.xlu0 %1460
        %1464 = vset.pattern.permute.xlu0 0
        %1465 = vperm.xlu0 %1464, %v606
        %v1466 = vpop.permute.xlu0 %1465
        %1469 = vset.pattern.permute.xlu0 0
        %1470 = vperm.xlu0 %1469, %v607
        %v1471 = vpop.permute.xlu0 %1470
        %1474 = vset.pattern.permute.xlu0 0
        %1475 = vperm.xlu0 %1474, %v608
        %v1476 = vpop.permute.xlu0 %1475
        %1479 = vset.pattern.permute.xlu0 0
        %1480 = vperm.xlu0 %1479, %v609
        %v1481 = vpop.permute.xlu0 %1480
        %1484 = vset.pattern.permute.xlu0 0
        %1485 = vperm.xlu0 %1484, %v610
        %v1486 = vpop.permute.xlu0 %1485
        %1489 = vset.pattern.permute.xlu0 0
        %1490 = vperm.xlu0 %1489, %v611
        %v1491 = vpop.permute.xlu0 %1490
        %1494 = vset.pattern.permute.xlu0 0
        %1495 = vperm.xlu0 %1494, %v612
        %v1496 = vpop.permute.xlu0 %1495
        %1499 = vset.pattern.permute.xlu0 0
        %1500 = vperm.xlu0 %1499, %v613
        %v1501 = vpop.permute.xlu0 %1500
        %1504 = vset.pattern.permute.xlu0 0
        %1505 = vperm.xlu0 %1504, %v614
        %v1506 = vpop.permute.xlu0 %1505
        %1509 = vset.pattern.permute.xlu0 0
        %1510 = vperm.xlu0 %1509, %v615
        %v1511 = vpop.permute.xlu0 %1510
        %1514 = vset.pattern.permute.xlu0 0
        %1515 = vperm.xlu0 %1514, %v616
        %v1516 = vpop.permute.xlu0 %1515
        %1519 = vset.pattern.permute.xlu0 0
        %1520 = vperm.xlu0 %1519, %v617
        %v1521 = vpop.permute.xlu0 %1520
        %1524 = vset.pattern.permute.xlu0 0
        %1525 = vperm.xlu0 %1524, %v618
        %v1526 = vpop.permute.xlu0 %1525
        %1529 = vset.pattern.permute.xlu0 0
        %1530 = vperm.xlu0 %1529, %v619
        %v1531 = vpop.permute.xlu0 %1530
        %v1533 = vmul.f32 %v1436, %v1456
        %v1534 = vmul.f32 %v1437, %v1461
        %v1535 = vmul.f32 %v1438, %v1466
        %v1536 = vmul.f32 %v1439, %v1471
        %v1537 = vmul.f32 %v1440, %v1476
        %v1538 = vmul.f32 %v1441, %v1481
        %v1539 = vmul.f32 %v1442, %v1486
        %v1540 = vmul.f32 %v1443, %v1491
        %v1541 = vmul.f32 %v1444, %v1496
        %v1542 = vmul.f32 %v1445, %v1501
        %v1543 = vmul.f32 %v1446, %v1506
        %v1544 = vmul.f32 %v1447, %v1511
        %v1545 = vmul.f32 %v1448, %v1516
        %v1546 = vmul.f32 %v1449, %v1521
        %v1547 = vmul.f32 %v1450, %v1526
        %v1548 = vmul.f32 %v1451, %v1531
        %v1549 = vlaneseq
        %v1550 = vshrl.u32 %v1549, 7
        %v1551 = vsub.s32 0, %v1550
        %v1552 = vrot.slane %v1452, %v1551
        %v1553 = vmul.f32 %v1552, %v1533
        %v1554 = vmul.f32 %v1552, %v1534
        %v1555 = vmul.f32 %v1552, %v1535
        %v1556 = vmul.f32 %v1552, %v1536
        %v1557 = vmul.f32 %v1552, %v1537
        %v1558 = vmul.f32 %v1552, %v1538
        %v1559 = vmul.f32 %v1552, %v1539
        %v1560 = vmul.f32 %v1552, %v1540
        %v1561 = vmul.f32 %v1552, %v1541
        %v1562 = vmul.f32 %v1552, %v1542
        %v1563 = vmul.f32 %v1552, %v1543
        %v1564 = vmul.f32 %v1552, %v1544
        %v1565 = vmul.f32 %v1552, %v1545
        %v1566 = vmul.f32 %v1552, %v1546
        %v1567 = vmul.f32 %v1552, %v1547
        %v1568 = vmul.f32 %v1552, %v1548
        %v1569 = vlaneseq
        %v1570 = vshrl.u32 %v1569, 7
        %v1571 = vsub.s32 1, %v1570
        %v1572 = vrot.slane %v1452, %v1571
        %v1573 = vadd.f32 %v1553, %v1572
        %v1574 = vadd.f32 %v1554, %v1572
        %v1575 = vadd.f32 %v1555, %v1572
        %v1576 = vadd.f32 %v1556, %v1572
        %v1577 = vadd.f32 %v1557, %v1572
        %v1578 = vadd.f32 %v1558, %v1572
        %v1579 = vadd.f32 %v1559, %v1572
        %v1580 = vadd.f32 %v1560, %v1572
        %v1581 = vadd.f32 %v1561, %v1572
        %v1582 = vadd.f32 %v1562, %v1572
        %v1583 = vadd.f32 %v1563, %v1572
        %v1584 = vadd.f32 %v1564, %v1572
        %v1585 = vadd.f32 %v1565, %v1572
        %v1586 = vadd.f32 %v1566, %v1572
        %v1587 = vadd.f32 %v1567, %v1572
        %v1588 = vadd.f32 %v1568, %v1572
        %v1589 = vmax.f32 %v1573, 0.0
        %v1590 = vmax.f32 %v1574, 0.0
        %v1591 = vmax.f32 %v1575, 0.0
        %v1592 = vmax.f32 %v1576, 0.0
        %v1593 = vmax.f32 %v1577, 0.0
        %v1594 = vmax.f32 %v1578, 0.0
        %v1595 = vmax.f32 %v1579, 0.0
        %v1596 = vmax.f32 %v1580, 0.0
        %v1597 = vmax.f32 %v1581, 0.0
        %v1598 = vmax.f32 %v1582, 0.0
        %v1599 = vmax.f32 %v1583, 0.0
        %v1600 = vmax.f32 %v1584, 0.0
        %v1601 = vmax.f32 %v1585, 0.0
        %v1602 = vmax.f32 %v1586, 0.0
        %v1603 = vmax.f32 %v1587, 0.0
        %v1604 = vmax.f32 %v1588, 0.0
        %v1605 = vadd.f32 %v748, %v1589
        %v1606 = vadd.f32 %v751, %v1590
        %v1607 = vadd.f32 %v756, %v1591
        %v1608 = vadd.f32 %v759, %v1592
        %v1609 = vadd.f32 %v764, %v1593
        %v1610 = vadd.f32 %v767, %v1594
        %v1611 = vadd.f32 %v772, %v1595
        %v1612 = vadd.f32 %v775, %v1596
        %v1613 = vadd.f32 %v780, %v1597
        %v1614 = vadd.f32 %v783, %v1598
        %v1615 = vadd.f32 %v788, %v1599
        %v1616 = vadd.f32 %v791, %v1600
        %v1617 = vadd.f32 %v796, %v1601
        %v1618 = vadd.f32 %v799, %v1602
        %v1619 = vadd.f32 %v804, %v1603
        %v1620 = vadd.f32 %v807, %v1604
        %1621 = vmatprep.subr.mxu0 0.0
        %1622 = vmatpush1.msra.mxu0 %v1620
        %1623 = vmatprep.subr.mxu0 0.0
        %1624 = vmatpush1.msra.mxu0 %v1619
        %1625 = vmatprep.subr.mxu0 0.0
        %1626 = vmatpush1.msra.mxu0 %v1618
        %1627 = vmatprep.subr.mxu0 0.0
        %1628 = vmatpush1.msra.mxu0 %v1617
        %1629 = vmatprep.subr.mxu0 0.0
        %1630 = vmatpush1.msra.mxu0 %v1616
        %1631 = vmatprep.subr.mxu0 0.0
        %1632 = vmatpush1.msra.mxu0 %v1615
        %1633 = vmatprep.subr.mxu0 0.0
        %1634 = vmatpush1.msra.mxu0 %v1614
        %1635 = vmatprep.subr.mxu0 0.0
        %1636 = vmatpush1.msra.mxu0 %v1613
        %1637 = vmatprep.subr.mxu0 0.0
        %1638 = vmatpush1.msra.mxu0 %v1612
        %1639 = vmatprep.subr.mxu0 0.0
        %1640 = vmatpush1.msra.mxu0 %v1611
        %1641 = vmatprep.subr.mxu0 0.0
        %1642 = vmatpush1.msra.mxu0 %v1610
        %1643 = vmatprep.subr.mxu0 0.0
        %1644 = vmatpush1.msra.mxu0 %v1609
        %1645 = vmatprep.subr.mxu0 0.0
        %1646 = vmatpush1.msra.mxu0 %v1608
        %1647 = vmatprep.subr.mxu0 0.0
        %1648 = vmatpush1.msra.mxu0 %v1607
        %1649 = vmatprep.subr.mxu0 0.0
        %1650 = vmatpush1.msra.mxu0 %v1606
        %1651 = vmatprep.subr.mxu0 0.0
        %1652 = vmatpush1.msra.mxu0 %v1605
        %1653 = vmatprep.subr.mxu0 0.0
        %1654 = vmatpush2.msra.mxu0 0.0
        %1655 = vmatprep.subr.mxu0 0.0
        %1656 = vmatpush2.msra.mxu0 0.0
        %1657 = vmatprep.subr.mxu0 0.0
        %1658 = vmatpush2.msra.mxu0 0.0
        %1659 = vmatprep.subr.mxu0 0.0
        %1660 = vmatpush2.msra.mxu0 0.0
        %1661 = vmatprep.subr.mxu0 0.0
        %1662 = vmatpush2.msra.mxu0 0.0
        %1663 = vmatprep.subr.mxu0 0.0
        %1664 = vmatpush2.msra.mxu0 0.0
        %1665 = vmatprep.subr.mxu0 0.0
        %1666 = vmatpush2.msra.mxu0 0.0
        %1667 = vmatprep.subr.mxu0 0.0
        %1668 = vmatpush2.msra.mxu0 0.0
        %1669 = vmatprep.subr.mxu0 0.0
        %1670 = vmatpush2.msra.mxu0 0.0
        %1671 = vmatprep.subr.mxu0 0.0
        %1672 = vmatpush2.msra.mxu0 0.0
        %1673 = vmatprep.subr.mxu0 0.0
        %1674 = vmatpush2.msra.mxu0 0.0
        %1675 = vmatprep.subr.mxu0 0.0
        %1676 = vmatpush2.msra.mxu0 0.0
        %1677 = vmatprep.subr.mxu0 0.0
        %1678 = vmatpush2.msra.mxu0 0.0
        %1679 = vmatprep.subr.mxu0 0.0
        %1680 = vmatpush2.msra.mxu0 0.0
        %1681 = vmatprep.subr.mxu0 0.0
        %1682 = vmatpush2.msra.mxu0 0.0
        %1683 = vmatprep.subr.mxu0 0.0
        %1684 = vmatpush2.msra.mxu0 0.0
        %1685 = vmatprep.mubr.f32.mxu0 0.0
        %1686 = vmatmul.mubr.f32.gmra.mxu0 %v603
        %v1687 = vpop.f32.mrf.mxu0
        %v1688 = vadd.f32 0.0, %v1687
        %v1689 = vpop.f32.mrf.mxu0
        %1690 = vdwg.mxu0
        %1691 = vst [vmem:[#allocation2 + $0x8] sm:$0xff] %v1688
        %v1692 = vpack.c.bf16 %v1606, %v1605
        %v1693 = vpack.c.bf16 %v1608, %v1607
        %v1694 = vpack.c.bf16 %v1610, %v1609
        %v1695 = vpack.c.bf16 %v1612, %v1611
        %v1696 = vpack.c.bf16 %v1614, %v1613
        %v1697 = vpack.c.bf16 %v1616, %v1615
        %v1698 = vpack.c.bf16 %v1618, %v1617
        %v1699 = vpack.c.bf16 %v1620, %v1619
        %1700 = vmatprep.subr.bf16.mxu0 0
        %1701 = vmatpush1.bf16.msra.mxu0 %v1699
        %1702 = vmatprep.subr.bf16.mxu0 0
        %1703 = vmatpush1.bf16.msra.mxu0 %v1698
        %1704 = vmatprep.subr.bf16.mxu0 0
        %1705 = vmatpush1.bf16.msra.mxu0 %v1697
        %1706 = vmatprep.subr.bf16.mxu0 0
        %1707 = vmatpush1.bf16.msra.mxu0 %v1696
        %1708 = vmatprep.subr.bf16.mxu0 0
        %1709 = vmatpush1.bf16.msra.mxu0 %v1695
        %1710 = vmatprep.subr.bf16.mxu0 0
        %1711 = vmatpush1.bf16.msra.mxu0 %v1694
        %1712 = vmatprep.subr.bf16.mxu0 0
        %1713 = vmatpush1.bf16.msra.mxu0 %v1693
        %1714 = vmatprep.subr.bf16.mxu0 0
        %1715 = vmatpush1.bf16.msra.mxu0 %v1692
        %1716 = vmatprep.subr.bf16.mxu0 0
        %1717 = vmatpush2.bf16.msra.mxu0 0
        %1718 = vmatprep.subr.bf16.mxu0 0
        %1719 = vmatpush2.bf16.msra.mxu0 0
        %1720 = vmatprep.subr.bf16.mxu0 0
        %1721 = vmatpush2.bf16.msra.mxu0 0
        %1722 = vmatprep.subr.bf16.mxu0 0
        %1723 = vmatpush2.bf16.msra.mxu0 0
        %1724 = vmatprep.subr.bf16.mxu0 0
        %1725 = vmatpush2.bf16.msra.mxu0 0
        %1726 = vmatprep.subr.bf16.mxu0 0
        %1727 = vmatpush2.bf16.msra.mxu0 0
        %1728 = vmatprep.subr.bf16.mxu0 0
        %1729 = vmatpush2.bf16.msra.mxu0 0
        %1730 = vmatprep.subr.bf16.mxu0 0
        %1731 = vmatpush2.bf16.msra.mxu0 0
        %1732 = vmatprep.mubr.bf16.mxu0 0
        %1733 = vmatmul.mubr.bf16.gmra.mxu0 %v921
        %v1734 = vpop.f32.mrf.mxu0
        %v1735 = vadd.f32 0.0, %v1734
        %v1736 = vpop.f32.mrf.mxu0
        %v1737 = vpop.f32.mrf.mxu0
        %v1738 = vadd.f32 0.0, %v1737
        %v1739 = vpop.f32.mrf.mxu0
        %1740 = vmatprep.mubr.bf16.mxu0 0
        %1741 = vmatmul.mubr.bf16.gmra.mxu0 %v922
        %v1742 = vpop.f32.mrf.mxu0
        %v1743 = vadd.f32 0.0, %v1742
        %v1744 = vpop.f32.mrf.mxu0
        %v1745 = vpop.f32.mrf.mxu0
        %v1746 = vadd.f32 0.0, %v1745
        %v1747 = vpop.f32.mrf.mxu0
        %1748 = vmatprep.mubr.bf16.mxu0 0
        %1749 = vmatmul.mubr.bf16.gmra.mxu0 %v923
        %v1750 = vpop.f32.mrf.mxu0
        %v1751 = vadd.f32 0.0, %v1750
        %v1752 = vpop.f32.mrf.mxu0
        %v1753 = vpop.f32.mrf.mxu0
        %v1754 = vadd.f32 0.0, %v1753
        %v1755 = vpop.f32.mrf.mxu0
        %1756 = vmatprep.mubr.bf16.mxu0 0
        %1757 = vmatmul.mubr.bf16.gmra.mxu0 %v924
        %v1758 = vpop.f32.mrf.mxu0
        %v1759 = vadd.f32 0.0, %v1758
        %v1760 = vpop.f32.mrf.mxu0
        %v1761 = vpop.f32.mrf.mxu0
        %v1762 = vadd.f32 0.0, %v1761
        %v1763 = vpop.f32.mrf.mxu0
        %1764 = vmatprep.mubr.bf16.mxu0 0
        %1765 = vmatmul.mubr.bf16.gmra.mxu0 %v925
        %v1766 = vpop.f32.mrf.mxu0
        %v1767 = vadd.f32 0.0, %v1766
        %v1768 = vpop.f32.mrf.mxu0
        %v1769 = vpop.f32.mrf.mxu0
        %v1770 = vadd.f32 0.0, %v1769
        %v1771 = vpop.f32.mrf.mxu0
        %1772 = vmatprep.mubr.bf16.mxu0 0
        %1773 = vmatmul.mubr.bf16.gmra.mxu0 %v926
        %v1774 = vpop.f32.mrf.mxu0
        %v1775 = vadd.f32 0.0, %v1774
        %v1776 = vpop.f32.mrf.mxu0
        %v1777 = vpop.f32.mrf.mxu0
        %v1778 = vadd.f32 0.0, %v1777
        %v1779 = vpop.f32.mrf.mxu0
        %1780 = vmatprep.mubr.bf16.mxu0 0
        %1781 = vmatmul.mubr.bf16.gmra.mxu0 %v927
        %v1782 = vpop.f32.mrf.mxu0
        %v1783 = vadd.f32 0.0, %v1782
        %v1784 = vpop.f32.mrf.mxu0
        %v1785 = vpop.f32.mrf.mxu0
        %v1786 = vadd.f32 0.0, %v1785
        %v1787 = vpop.f32.mrf.mxu0
        %1788 = vmatprep.mubr.bf16.mxu0 0
        %1789 = vmatmul.mubr.bf16.gmra.mxu0 %v928
        %v1790 = vpop.f32.mrf.mxu0
        %v1791 = vadd.f32 0.0, %v1790
        %v1792 = vpop.f32.mrf.mxu0
        %v1793 = vpop.f32.mrf.mxu0
        %v1794 = vadd.f32 0.0, %v1793
        %v1795 = vpop.f32.mrf.mxu0
        %1796 = vdwg.mxu0
        %s1797 = sld [smem:[#allocation7 + $0x1]]
        %v1798 = vstv %s1797
        %v1799 = vmul.f32 %v1798, %v1605
        %v1800 = vmul.f32 %v1798, %v1606
        %v1801 = vmul.f32 %v1798, %v1607
        %v1802 = vmul.f32 %v1798, %v1608
        %v1803 = vmul.f32 %v1798, %v1609
        %v1804 = vmul.f32 %v1798, %v1610
        %v1805 = vmul.f32 %v1798, %v1611
        %v1806 = vmul.f32 %v1798, %v1612
        %v1807 = vmul.f32 %v1798, %v1613
        %v1808 = vmul.f32 %v1798, %v1614
        %v1809 = vmul.f32 %v1798, %v1615
        %v1810 = vmul.f32 %v1798, %v1616
        %v1811 = vmul.f32 %v1798, %v1617
        %v1812 = vmul.f32 %v1798, %v1618
        %v1813 = vmul.f32 %v1798, %v1619
        %v1814 = vmul.f32 %v1798, %v1620
        %v1815 = vadd.f32 %v1799, %v1735
        %v1816 = vadd.f32 %v1800, %v1738
        %v1817 = vadd.f32 %v1801, %v1743
        %v1818 = vadd.f32 %v1802, %v1746
        %v1819 = vadd.f32 %v1803, %v1751
        %v1820 = vadd.f32 %v1804, %v1754
        %v1821 = vadd.f32 %v1805, %v1759
        %v1822 = vadd.f32 %v1806, %v1762
        %v1823 = vadd.f32 %v1807, %v1767
        %v1824 = vadd.f32 %v1808, %v1770
        %v1825 = vadd.f32 %v1809, %v1775
        %v1826 = vadd.f32 %v1810, %v1778
        %v1827 = vadd.f32 %v1811, %v1783
        %v1828 = vadd.f32 %v1812, %v1786
        %v1829 = vadd.f32 %v1813, %v1791
        %v1830 = vadd.f32 %v1814, %v1794
        %v1831 = vpack.c.bf16 %v1816, %v1815
        %v1832 = vpack.c.bf16 %v1818, %v1817
        %v1833 = vpack.c.bf16 %v1820, %v1819
        %v1834 = vpack.c.bf16 %v1822, %v1821
        %v1835 = vpack.c.bf16 %v1824, %v1823
        %v1836 = vpack.c.bf16 %v1826, %v1825
        %v1837 = vpack.c.bf16 %v1828, %v1827
        %v1838 = vpack.c.bf16 %v1830, %v1829
        %s1839 = scalar_lea.vmem [#allocation8], 64
        %v1840 = vld [vmem:[%s1839] sm:$0xf]
        %v1841 = vld [vmem:[%s1839 + $0x4] sm:$0xf]
        %v1842 = vld [vmem:[%s1839 + $0x8] sm:$0xf]
        %v1843 = vld [vmem:[%s1839 + $0xc] sm:$0xf]
        %v1844 = vld [vmem:[%s1839 + $0x10] sm:$0xf]
        %v1845 = vld [vmem:[%s1839 + $0x14] sm:$0xf]
        %v1846 = vld [vmem:[%s1839 + $0x18] sm:$0xf]
        %v1847 = vld [vmem:[%s1839 + $0x1c] sm:$0xf]
        %v1848 = vld [vmem:[%s1839 + $0x20] sm:$0xf]
        %v1849 = vld [vmem:[%s1839 + $0x24] sm:$0xf]
        %v1850 = vld [vmem:[%s1839 + $0x28] sm:$0xf]
        %v1851 = vld [vmem:[%s1839 + $0x2c] sm:$0xf]
        %v1852 = vld [vmem:[%s1839 + $0x30] sm:$0xf]
        %v1853 = vld [vmem:[%s1839 + $0x34] sm:$0xf]
        %v1854 = vld [vmem:[%s1839 + $0x38] sm:$0xf]
        %v1855 = vld [vmem:[%s1839 + $0x3c] sm:$0xf]
        %s1856 = scalar_lea.vmem %s8, 1
        %v1857 = vld [vmem:[%s1856] sm:$0x1]
        %v1859 = vlaneseq
        %v1860 = vshrl.u32 %v1859, 7
        %v1861 = vsub.s32 0, %v1860
        %v1862 = vrot.slane %v1857, %v1861
        %v1880 = vunpack.c.l.b16 %v1840
        %v1881 = vunpack.c.l.b16 %v1841
        %v1882 = vunpack.c.l.b16 %v1842
        %v1883 = vunpack.c.l.b16 %v1843
        %v1884 = vunpack.c.l.b16 %v1844
        %v1885 = vunpack.c.l.b16 %v1845
        %v1886 = vunpack.c.l.b16 %v1846
        %v1887 = vunpack.c.l.b16 %v1847
        %v1888 = vunpack.c.l.b16 %v1848
        %v1889 = vunpack.c.l.b16 %v1849
        %v1890 = vunpack.c.l.b16 %v1850
        %v1891 = vunpack.c.l.b16 %v1851
        %v1892 = vunpack.c.l.b16 %v1852
        %v1893 = vunpack.c.l.b16 %v1853
        %v1894 = vunpack.c.l.b16 %v1854
        %v1895 = vunpack.c.l.b16 %v1855
        %v1896 = vpack.c.b16 %v1881, %v1880
        %v1897 = vpack.c.b16 %v1883, %v1882
        %v1898 = vpack.c.b16 %v1885, %v1884
        %v1899 = vpack.c.b16 %v1887, %v1886
        %v1900 = vpack.c.b16 %v1889, %v1888
        %v1901 = vpack.c.b16 %v1891, %v1890
        %v1902 = vpack.c.b16 %v1893, %v1892
        %v1903 = vpack.c.b16 %v1895, %v1894
        %1912 = vmatprep.subr.bf16.mxu0 0
        %1913 = vmatpush1.bf16.msra.mxu0 %v1903
        %1914 = vmatprep.subr.bf16.mxu0 0
        %1915 = vmatpush1.bf16.msra.mxu0 %v1902
        %1916 = vmatprep.subr.bf16.mxu0 0
        %1917 = vmatpush1.bf16.msra.mxu0 %v1901
        %1918 = vmatprep.subr.bf16.mxu0 0
        %1919 = vmatpush1.bf16.msra.mxu0 %v1900
        %1920 = vmatprep.subr.bf16.mxu0 0
        %1921 = vmatpush1.bf16.msra.mxu0 %v1899
        %1922 = vmatprep.subr.bf16.mxu0 0
        %1923 = vmatpush1.bf16.msra.mxu0 %v1898
        %1924 = vmatprep.subr.bf16.mxu0 0
        %1925 = vmatpush1.bf16.msra.mxu0 %v1897
        %1926 = vmatprep.subr.bf16.mxu0 0
        %1927 = vmatpush1.bf16.msra.mxu0 %v1896
        %1928 = vmatprep.subr.bf16.mxu0 0
        %1929 = vmatpush2.bf16.msra.mxu0 0
        %1930 = vmatprep.subr.bf16.mxu0 0
        %1931 = vmatpush2.bf16.msra.mxu0 0
        %1932 = vmatprep.subr.bf16.mxu0 0
        %1933 = vmatpush2.bf16.msra.mxu0 0
        %1934 = vmatprep.subr.bf16.mxu0 0
        %1935 = vmatpush2.bf16.msra.mxu0 0
        %1936 = vmatprep.subr.bf16.mxu0 0
        %1937 = vmatpush2.bf16.msra.mxu0 0
        %1938 = vmatprep.subr.bf16.mxu0 0
        %1939 = vmatpush2.bf16.msra.mxu0 0
        %1940 = vmatprep.subr.bf16.mxu0 0
        %1941 = vmatpush2.bf16.msra.mxu0 0
        %1942 = vmatprep.subr.bf16.mxu0 0
        %1943 = vmatpush2.bf16.msra.mxu0 0
        %1944 = vmatprep.mubr.bf16.mxu0 0
        %1945 = vmatmul.mubr.bf16.gmra.mxu0 %v1831
        %v1946 = vpop.f32.mrf.mxu0
        %v1947 = vadd.f32 %v1862, %v1946
        %v1948 = vpop.f32.mrf.mxu0
        %v1949 = vpop.f32.mrf.mxu0
        %v1950 = vadd.f32 %v1862, %v1949
        %v1951 = vpop.f32.mrf.mxu0
        %1952 = vmatprep.mubr.bf16.mxu0 0
        %1953 = vmatmul.mubr.bf16.gmra.mxu0 %v1832
        %v1954 = vpop.f32.mrf.mxu0
        %v1955 = vadd.f32 %v1862, %v1954
        %v1956 = vpop.f32.mrf.mxu0
        %v1957 = vpop.f32.mrf.mxu0
        %v1958 = vadd.f32 %v1862, %v1957
        %v1959 = vpop.f32.mrf.mxu0
        %1960 = vmatprep.mubr.bf16.mxu0 0
        %1961 = vmatmul.mubr.bf16.gmra.mxu0 %v1833
        %v1962 = vpop.f32.mrf.mxu0
        %v1963 = vadd.f32 %v1862, %v1962
        %v1964 = vpop.f32.mrf.mxu0
        %v1965 = vpop.f32.mrf.mxu0
        %v1966 = vadd.f32 %v1862, %v1965
        %v1967 = vpop.f32.mrf.mxu0
        %1968 = vmatprep.mubr.bf16.mxu0 0
        %1969 = vmatmul.mubr.bf16.gmra.mxu0 %v1834
        %v1970 = vpop.f32.mrf.mxu0
        %v1971 = vadd.f32 %v1862, %v1970
        %v1972 = vpop.f32.mrf.mxu0
        %v1973 = vpop.f32.mrf.mxu0
        %v1974 = vadd.f32 %v1862, %v1973
        %v1975 = vpop.f32.mrf.mxu0
        %1976 = vmatprep.mubr.bf16.mxu0 0
        %1977 = vmatmul.mubr.bf16.gmra.mxu0 %v1835
        %v1978 = vpop.f32.mrf.mxu0
        %v1979 = vadd.f32 %v1862, %v1978
        %v1980 = vpop.f32.mrf.mxu0
        %v1981 = vpop.f32.mrf.mxu0
        %v1982 = vadd.f32 %v1862, %v1981
        %v1983 = vpop.f32.mrf.mxu0
        %1984 = vmatprep.mubr.bf16.mxu0 0
        %1985 = vmatmul.mubr.bf16.gmra.mxu0 %v1836
        %v1986 = vpop.f32.mrf.mxu0
        %v1987 = vadd.f32 %v1862, %v1986
        %v1988 = vpop.f32.mrf.mxu0
        %v1989 = vpop.f32.mrf.mxu0
        %v1990 = vadd.f32 %v1862, %v1989
        %v1991 = vpop.f32.mrf.mxu0
        %1992 = vmatprep.mubr.bf16.mxu0 0
        %1993 = vmatmul.mubr.bf16.gmra.mxu0 %v1837
        %v1994 = vpop.f32.mrf.mxu0
        %v1995 = vadd.f32 %v1862, %v1994
        %v1996 = vpop.f32.mrf.mxu0
        %v1997 = vpop.f32.mrf.mxu0
        %v1998 = vadd.f32 %v1862, %v1997
        %v1999 = vpop.f32.mrf.mxu0
        %2000 = vmatprep.mubr.bf16.mxu0 0
        %2001 = vmatmul.mubr.bf16.gmra.mxu0 %v1838
        %v2002 = vpop.f32.mrf.mxu0
        %v2003 = vadd.f32 %v1862, %v2002
        %v2004 = vpop.f32.mrf.mxu0
        %v2005 = vpop.f32.mrf.mxu0
        %v2006 = vadd.f32 %v1862, %v2005
        %v2007 = vpop.f32.mrf.mxu0
        %2008 = vdwg.mxu0
        %v2009 = vmax.f32 %v1947, 0.0
        %v2010 = vmax.f32 %v1950, 0.0
        %v2011 = vmax.f32 %v1955, 0.0
        %v2012 = vmax.f32 %v1958, 0.0
        %v2013 = vmax.f32 %v1963, 0.0
        %v2014 = vmax.f32 %v1966, 0.0
        %v2015 = vmax.f32 %v1971, 0.0
        %v2016 = vmax.f32 %v1974, 0.0
        %v2017 = vmax.f32 %v1979, 0.0
        %v2018 = vmax.f32 %v1982, 0.0
        %v2019 = vmax.f32 %v1987, 0.0
        %v2020 = vmax.f32 %v1990, 0.0
        %v2021 = vmax.f32 %v1995, 0.0
        %v2022 = vmax.f32 %v1998, 0.0
        %v2023 = vmax.f32 %v2003, 0.0
        %v2024 = vmax.f32 %v2006, 0.0
        %v2025 = vpack.c.bf16 %v2010, %v2009
        %v2026 = vpack.c.bf16 %v2012, %v2011
        %v2027 = vpack.c.bf16 %v2014, %v2013
        %v2028 = vpack.c.bf16 %v2016, %v2015
        %v2029 = vpack.c.bf16 %v2018, %v2017
        %v2030 = vpack.c.bf16 %v2020, %v2019
        %v2031 = vpack.c.bf16 %v2022, %v2021
        %v2032 = vpack.c.bf16 %v2024, %v2023
        %s2033 = scalar_lea.vmem [#allocation10], 64
        %v2034 = vld [vmem:[%s2033] sm:$0xf]
        %v2035 = vld [vmem:[%s2033 + $0x4] sm:$0xf]
        %v2036 = vld [vmem:[%s2033 + $0x8] sm:$0xf]
        %v2037 = vld [vmem:[%s2033 + $0xc] sm:$0xf]
        %v2038 = vld [vmem:[%s2033 + $0x10] sm:$0xf]
        %v2039 = vld [vmem:[%s2033 + $0x14] sm:$0xf]
        %v2040 = vld [vmem:[%s2033 + $0x18] sm:$0xf]
        %v2041 = vld [vmem:[%s2033 + $0x1c] sm:$0xf]
        %v2042 = vld [vmem:[%s2033 + $0x20] sm:$0xf]
        %v2043 = vld [vmem:[%s2033 + $0x24] sm:$0xf]
        %v2044 = vld [vmem:[%s2033 + $0x28] sm:$0xf]
        %v2045 = vld [vmem:[%s2033 + $0x2c] sm:$0xf]
        %v2046 = vld [vmem:[%s2033 + $0x30] sm:$0xf]
        %v2047 = vld [vmem:[%s2033 + $0x34] sm:$0xf]
        %v2048 = vld [vmem:[%s2033 + $0x38] sm:$0xf]
        %v2049 = vld [vmem:[%s2033 + $0x3c] sm:$0xf]
        %s2050 = scalar_lea.vmem %s10, 1
        %v2051 = vld [vmem:[%s2050] sm:$0x1]
        %v2053 = vlaneseq
        %v2054 = vshrl.u32 %v2053, 7
        %v2055 = vsub.s32 0, %v2054
        %v2056 = vrot.slane %v2051, %v2055
        %v2074 = vunpack.c.l.b16 %v2034
        %v2075 = vunpack.c.l.b16 %v2035
        %v2076 = vunpack.c.l.b16 %v2036
        %v2077 = vunpack.c.l.b16 %v2037
        %v2078 = vunpack.c.l.b16 %v2038
        %v2079 = vunpack.c.l.b16 %v2039
        %v2080 = vunpack.c.l.b16 %v2040
        %v2081 = vunpack.c.l.b16 %v2041
        %v2082 = vunpack.c.l.b16 %v2042
        %v2083 = vunpack.c.l.b16 %v2043
        %v2084 = vunpack.c.l.b16 %v2044
        %v2085 = vunpack.c.l.b16 %v2045
        %v2086 = vunpack.c.l.b16 %v2046
        %v2087 = vunpack.c.l.b16 %v2047
        %v2088 = vunpack.c.l.b16 %v2048
        %v2089 = vunpack.c.l.b16 %v2049
        %v2090 = vpack.c.b16 %v2075, %v2074
        %v2091 = vpack.c.b16 %v2077, %v2076
        %v2092 = vpack.c.b16 %v2079, %v2078
        %v2093 = vpack.c.b16 %v2081, %v2080
        %v2094 = vpack.c.b16 %v2083, %v2082
        %v2095 = vpack.c.b16 %v2085, %v2084
        %v2096 = vpack.c.b16 %v2087, %v2086
        %v2097 = vpack.c.b16 %v2089, %v2088
        %2106 = vmatprep.subr.bf16.mxu0 0
        %2107 = vmatpush1.bf16.msra.mxu0 %v2097
        %2108 = vmatprep.subr.bf16.mxu0 0
        %2109 = vmatpush1.bf16.msra.mxu0 %v2096
        %2110 = vmatprep.subr.bf16.mxu0 0
        %2111 = vmatpush1.bf16.msra.mxu0 %v2095
        %2112 = vmatprep.subr.bf16.mxu0 0
        %2113 = vmatpush1.bf16.msra.mxu0 %v2094
        %2114 = vmatprep.subr.bf16.mxu0 0
        %2115 = vmatpush1.bf16.msra.mxu0 %v2093
        %2116 = vmatprep.subr.bf16.mxu0 0
        %2117 = vmatpush1.bf16.msra.mxu0 %v2092
        %2118 = vmatprep.subr.bf16.mxu0 0
        %2119 = vmatpush1.bf16.msra.mxu0 %v2091
        %2120 = vmatprep.subr.bf16.mxu0 0
        %2121 = vmatpush1.bf16.msra.mxu0 %v2090
        %2122 = vmatprep.subr.bf16.mxu0 0
        %2123 = vmatpush2.bf16.msra.mxu0 0
        %2124 = vmatprep.subr.bf16.mxu0 0
        %2125 = vmatpush2.bf16.msra.mxu0 0
        %2126 = vmatprep.subr.bf16.mxu0 0
        %2127 = vmatpush2.bf16.msra.mxu0 0
        %2128 = vmatprep.subr.bf16.mxu0 0
        %2129 = vmatpush2.bf16.msra.mxu0 0
        %2130 = vmatprep.subr.bf16.mxu0 0
        %2131 = vmatpush2.bf16.msra.mxu0 0
        %2132 = vmatprep.subr.bf16.mxu0 0
        %2133 = vmatpush2.bf16.msra.mxu0 0
        %2134 = vmatprep.subr.bf16.mxu0 0
        %2135 = vmatpush2.bf16.msra.mxu0 0
        %2136 = vmatprep.subr.bf16.mxu0 0
        %2137 = vmatpush2.bf16.msra.mxu0 0
        %2138 = vmatprep.mubr.bf16.mxu0 0
        %2139 = vmatmul.mubr.bf16.gmra.mxu0 %v2025
        %v2140 = vpop.f32.mrf.mxu0
        %v2141 = vadd.f32 %v2056, %v2140
        %v2142 = vpop.f32.mrf.mxu0
        %v2143 = vpop.f32.mrf.mxu0
        %v2144 = vadd.f32 %v2056, %v2143
        %v2145 = vpop.f32.mrf.mxu0
        %2146 = vmatprep.mubr.bf16.mxu0 0
        %2147 = vmatmul.mubr.bf16.gmra.mxu0 %v2026
        %v2148 = vpop.f32.mrf.mxu0
        %v2149 = vadd.f32 %v2056, %v2148
        %v2150 = vpop.f32.mrf.mxu0
        %v2151 = vpop.f32.mrf.mxu0
        %v2152 = vadd.f32 %v2056, %v2151
        %v2153 = vpop.f32.mrf.mxu0
        %2154 = vmatprep.mubr.bf16.mxu0 0
        %2155 = vmatmul.mubr.bf16.gmra.mxu0 %v2027
        %v2156 = vpop.f32.mrf.mxu0
        %v2157 = vadd.f32 %v2056, %v2156
        %v2158 = vpop.f32.mrf.mxu0
        %v2159 = vpop.f32.mrf.mxu0
        %v2160 = vadd.f32 %v2056, %v2159
        %v2161 = vpop.f32.mrf.mxu0
        %2162 = vmatprep.mubr.bf16.mxu0 0
        %2163 = vmatmul.mubr.bf16.gmra.mxu0 %v2028
        %v2164 = vpop.f32.mrf.mxu0
        %v2165 = vadd.f32 %v2056, %v2164
        %v2166 = vpop.f32.mrf.mxu0
        %v2167 = vpop.f32.mrf.mxu0
        %v2168 = vadd.f32 %v2056, %v2167
        %v2169 = vpop.f32.mrf.mxu0
        %2170 = vmatprep.mubr.bf16.mxu0 0
        %2171 = vmatmul.mubr.bf16.gmra.mxu0 %v2029
        %v2172 = vpop.f32.mrf.mxu0
        %v2173 = vadd.f32 %v2056, %v2172
        %v2174 = vpop.f32.mrf.mxu0
        %v2175 = vpop.f32.mrf.mxu0
        %v2176 = vadd.f32 %v2056, %v2175
        %v2177 = vpop.f32.mrf.mxu0
        %2178 = vmatprep.mubr.bf16.mxu0 0
        %2179 = vmatmul.mubr.bf16.gmra.mxu0 %v2030
        %v2180 = vpop.f32.mrf.mxu0
        %v2181 = vadd.f32 %v2056, %v2180
        %v2182 = vpop.f32.mrf.mxu0
        %v2183 = vpop.f32.mrf.mxu0
        %v2184 = vadd.f32 %v2056, %v2183
        %v2185 = vpop.f32.mrf.mxu0
        %2186 = vmatprep.mubr.bf16.mxu0 0
        %2187 = vmatmul.mubr.bf16.gmra.mxu0 %v2031
        %v2188 = vpop.f32.mrf.mxu0
        %v2189 = vadd.f32 %v2056, %v2188
        %v2190 = vpop.f32.mrf.mxu0
        %v2191 = vpop.f32.mrf.mxu0
        %v2192 = vadd.f32 %v2056, %v2191
        %v2193 = vpop.f32.mrf.mxu0
        %2194 = vmatprep.mubr.bf16.mxu0 0
        %2195 = vmatmul.mubr.bf16.gmra.mxu0 %v2032
        %v2196 = vpop.f32.mrf.mxu0
        %v2197 = vadd.f32 %v2056, %v2196
        %v2198 = vpop.f32.mrf.mxu0
        %v2199 = vpop.f32.mrf.mxu0
        %v2200 = vadd.f32 %v2056, %v2199
        %v2201 = vpop.f32.mrf.mxu0
        %2202 = vdwg.mxu0
        %v2203 = vmax.f32 %v2141, 0.0
        %v2204 = vmax.f32 %v2144, 0.0
        %v2205 = vmax.f32 %v2149, 0.0
        %v2206 = vmax.f32 %v2152, 0.0
        %v2207 = vmax.f32 %v2157, 0.0
        %v2208 = vmax.f32 %v2160, 0.0
        %v2209 = vmax.f32 %v2165, 0.0
        %v2210 = vmax.f32 %v2168, 0.0
        %v2211 = vmax.f32 %v2173, 0.0
        %v2212 = vmax.f32 %v2176, 0.0
        %v2213 = vmax.f32 %v2181, 0.0
        %v2214 = vmax.f32 %v2184, 0.0
        %v2215 = vmax.f32 %v2189, 0.0
        %v2216 = vmax.f32 %v2192, 0.0
        %v2217 = vmax.f32 %v2197, 0.0
        %v2218 = vmax.f32 %v2200, 0.0
        %s2219 = scalar_lea.vmem %s11, 2
        %v2220 = vld [vmem:[%s2219] sm:$0x3]
        %v2221 = vmul.f32 %v2203, %v1456
        %v2222 = vmul.f32 %v2204, %v1461
        %v2223 = vmul.f32 %v2205, %v1466
        %v2224 = vmul.f32 %v2206, %v1471
        %v2225 = vmul.f32 %v2207, %v1476
        %v2226 = vmul.f32 %v2208, %v1481
        %v2227 = vmul.f32 %v2209, %v1486
        %v2228 = vmul.f32 %v2210, %v1491
        %v2229 = vmul.f32 %v2211, %v1496
        %v2230 = vmul.f32 %v2212, %v1501
        %v2231 = vmul.f32 %v2213, %v1506
        %v2232 = vmul.f32 %v2214, %v1511
        %v2233 = vmul.f32 %v2215, %v1516
        %v2234 = vmul.f32 %v2216, %v1521
        %v2235 = vmul.f32 %v2217, %v1526
        %v2236 = vmul.f32 %v2218, %v1531
        %v2237 = vlaneseq
        %v2238 = vshrl.u32 %v2237, 7
        %v2239 = vsub.s32 0, %v2238
        %v2240 = vrot.slane %v2220, %v2239
        %v2241 = vmul.f32 %v2240, %v2221
        %v2242 = vmul.f32 %v2240, %v2222
        %v2243 = vmul.f32 %v2240, %v2223
        %v2244 = vmul.f32 %v2240, %v2224
        %v2245 = vmul.f32 %v2240, %v2225
        %v2246 = vmul.f32 %v2240, %v2226
        %v2247 = vmul.f32 %v2240, %v2227
        %v2248 = vmul.f32 %v2240, %v2228
        %v2249 = vmul.f32 %v2240, %v2229
        %v2250 = vmul.f32 %v2240, %v2230
        %v2251 = vmul.f32 %v2240, %v2231
        %v2252 = vmul.f32 %v2240, %v2232
        %v2253 = vmul.f32 %v2240, %v2233
        %v2254 = vmul.f32 %v2240, %v2234
        %v2255 = vmul.f32 %v2240, %v2235
        %v2256 = vmul.f32 %v2240, %v2236
        %v2257 = vlaneseq
        %v2258 = vshrl.u32 %v2257, 7
        %v2259 = vsub.s32 1, %v2258
        %v2260 = vrot.slane %v2220, %v2259
        %v2261 = vadd.f32 %v2241, %v2260
        %v2262 = vadd.f32 %v2242, %v2260
        %v2263 = vadd.f32 %v2243, %v2260
        %v2264 = vadd.f32 %v2244, %v2260
        %v2265 = vadd.f32 %v2245, %v2260
        %v2266 = vadd.f32 %v2246, %v2260
        %v2267 = vadd.f32 %v2247, %v2260
        %v2268 = vadd.f32 %v2248, %v2260
        %v2269 = vadd.f32 %v2249, %v2260
        %v2270 = vadd.f32 %v2250, %v2260
        %v2271 = vadd.f32 %v2251, %v2260
        %v2272 = vadd.f32 %v2252, %v2260
        %v2273 = vadd.f32 %v2253, %v2260
        %v2274 = vadd.f32 %v2254, %v2260
        %v2275 = vadd.f32 %v2255, %v2260
        %v2276 = vadd.f32 %v2256, %v2260
        %v2277 = vmax.f32 %v2261, 0.0
        %v2278 = vmax.f32 %v2262, 0.0
        %v2279 = vmax.f32 %v2263, 0.0
        %v2280 = vmax.f32 %v2264, 0.0
        %v2281 = vmax.f32 %v2265, 0.0
        %v2282 = vmax.f32 %v2266, 0.0
        %v2283 = vmax.f32 %v2267, 0.0
        %v2284 = vmax.f32 %v2268, 0.0
        %v2285 = vmax.f32 %v2269, 0.0
        %v2286 = vmax.f32 %v2270, 0.0
        %v2287 = vmax.f32 %v2271, 0.0
        %v2288 = vmax.f32 %v2272, 0.0
        %v2289 = vmax.f32 %v2273, 0.0
        %v2290 = vmax.f32 %v2274, 0.0
        %v2291 = vmax.f32 %v2275, 0.0
        %v2292 = vmax.f32 %v2276, 0.0
        %v2293 = vadd.f32 %v1605, %v2277
        %v2294 = vadd.f32 %v1606, %v2278
        %v2295 = vadd.f32 %v1607, %v2279
        %v2296 = vadd.f32 %v1608, %v2280
        %v2297 = vadd.f32 %v1609, %v2281
        %v2298 = vadd.f32 %v1610, %v2282
        %v2299 = vadd.f32 %v1611, %v2283
        %v2300 = vadd.f32 %v1612, %v2284
        %v2301 = vadd.f32 %v1613, %v2285
        %v2302 = vadd.f32 %v1614, %v2286
        %v2303 = vadd.f32 %v1615, %v2287
        %v2304 = vadd.f32 %v1616, %v2288
        %v2305 = vadd.f32 %v1617, %v2289
        %v2306 = vadd.f32 %v1618, %v2290
        %v2307 = vadd.f32 %v1619, %v2291
        %v2308 = vadd.f32 %v1620, %v2292
        %2309 = vmatprep.subr.mxu0 0.0
        %2310 = vmatpush1.msra.mxu0 %v2308
        %2311 = vmatprep.subr.mxu0 0.0
        %2312 = vmatpush1.msra.mxu0 %v2307
        %2313 = vmatprep.subr.mxu0 0.0
        %2314 = vmatpush1.msra.mxu0 %v2306
        %2315 = vmatprep.subr.mxu0 0.0
        %2316 = vmatpush1.msra.mxu0 %v2305
        %2317 = vmatprep.subr.mxu0 0.0
        %2318 = vmatpush1.msra.mxu0 %v2304
        %2319 = vmatprep.subr.mxu0 0.0
        %2320 = vmatpush1.msra.mxu0 %v2303
        %2321 = vmatprep.subr.mxu0 0.0
        %2322 = vmatpush1.msra.mxu0 %v2302
        %2323 = vmatprep.subr.mxu0 0.0
        %2324 = vmatpush1.msra.mxu0 %v2301
        %2325 = vmatprep.subr.mxu0 0.0
        %2326 = vmatpush1.msra.mxu0 %v2300
        %2327 = vmatprep.subr.mxu0 0.0
        %2328 = vmatpush1.msra.mxu0 %v2299
        %2329 = vmatprep.subr.mxu0 0.0
        %2330 = vmatpush1.msra.mxu0 %v2298
        %2331 = vmatprep.subr.mxu0 0.0
        %2332 = vmatpush1.msra.mxu0 %v2297
        %2333 = vmatprep.subr.mxu0 0.0
        %2334 = vmatpush1.msra.mxu0 %v2296
        %2335 = vmatprep.subr.mxu0 0.0
        %2336 = vmatpush1.msra.mxu0 %v2295
        %2337 = vmatprep.subr.mxu0 0.0
        %2338 = vmatpush1.msra.mxu0 %v2294
        %2339 = vmatprep.subr.mxu0 0.0
        %2340 = vmatpush1.msra.mxu0 %v2293
        %2341 = vmatprep.subr.mxu0 0.0
        %2342 = vmatpush2.msra.mxu0 0.0
        %2343 = vmatprep.subr.mxu0 0.0
        %2344 = vmatpush2.msra.mxu0 0.0
        %2345 = vmatprep.subr.mxu0 0.0
        %2346 = vmatpush2.msra.mxu0 0.0
        %2347 = vmatprep.subr.mxu0 0.0
        %2348 = vmatpush2.msra.mxu0 0.0
        %2349 = vmatprep.subr.mxu0 0.0
        %2350 = vmatpush2.msra.mxu0 0.0
        %2351 = vmatprep.subr.mxu0 0.0
        %2352 = vmatpush2.msra.mxu0 0.0
        %2353 = vmatprep.subr.mxu0 0.0
        %2354 = vmatpush2.msra.mxu0 0.0
        %2355 = vmatprep.subr.mxu0 0.0
        %2356 = vmatpush2.msra.mxu0 0.0
        %2357 = vmatprep.subr.mxu0 0.0
        %2358 = vmatpush2.msra.mxu0 0.0
        %2359 = vmatprep.subr.mxu0 0.0
        %2360 = vmatpush2.msra.mxu0 0.0
        %2361 = vmatprep.subr.mxu0 0.0
        %2362 = vmatpush2.msra.mxu0 0.0
        %2363 = vmatprep.subr.mxu0 0.0
        %2364 = vmatpush2.msra.mxu0 0.0
        %2365 = vmatprep.subr.mxu0 0.0
        %2366 = vmatpush2.msra.mxu0 0.0
        %2367 = vmatprep.subr.mxu0 0.0
        %2368 = vmatpush2.msra.mxu0 0.0
        %2369 = vmatprep.subr.mxu0 0.0
        %2370 = vmatpush2.msra.mxu0 0.0
        %2371 = vmatprep.subr.mxu0 0.0
        %2372 = vmatpush2.msra.mxu0 0.0
        %2373 = vmatprep.mubr.f32.mxu0 0.0
        %2374 = vmatmul.mubr.f32.gmra.mxu0 %v603
        %v2375 = vpop.f32.mrf.mxu0
        %v2376 = vadd.f32 0.0, %v2375
        %v2377 = vpop.f32.mrf.mxu0
        %2378 = vdwg.mxu0
        %2379 = vst [vmem:[#allocation2 + $0x10] sm:$0xff] %v2376
        %v2380 = vld [vmem:[#allocation2] sm:$0xff]
        %v2381 = vld [vmem:[#allocation2 + $0x8] sm:$0xff]
        %v2382 = vld [vmem:[#allocation2 + $0x10] sm:$0xff]
        %v2383 = vld [vmem:[%s12] sm:$0xff]
        %v2384 = vld [vmem:[%s12 + $0x8] sm:$0xff]
        %v2385 = vld [vmem:[%s12 + $0x10] sm:$0xff]
        %v2386 = vld [vmem:[%s12 + $0x18] sm:$0xff]
        %v2387 = vld [vmem:[%s12 + $0x20] sm:$0xff]
        %v2388 = vld [vmem:[%s12 + $0x28] sm:$0xff]
        %v2389 = vld [vmem:[%s12 + $0x30] sm:$0xff]
        %v2390 = vld [vmem:[%s12 + $0x38] sm:$0xff]
        %v2391 = vld [vmem:[%s12 + $0x40] sm:$0xff]
        %v2392 = vld [vmem:[%s12 + $0x48] sm:$0xff]
        %v2393 = vld [vmem:[%s12 + $0x50] sm:$0xff]
        %v2394 = vld [vmem:[%s12 + $0x58] sm:$0xff]
        %v2395 = vld [vmem:[%s12 + $0x60] sm:$0xff]
        %v2396 = vld [vmem:[%s12 + $0x68] sm:$0xff]
        %v2397 = vld [vmem:[%s12 + $0x70] sm:$0xff]
        %v2398 = vld [vmem:[%s12 + $0x78] sm:$0xff]
        %v2399 = vld [vmem:[%s12 + $0x80] sm:$0xff]
        %v2400 = vld [vmem:[%s12 + $0x88] sm:$0xff]
        %v2401 = vld [vmem:[%s12 + $0x90] sm:$0xff]
        %v2402 = vld [vmem:[%s12 + $0x98] sm:$0xff]
        %v2403 = vld [vmem:[%s12 + $0xa0] sm:$0xff]
        %v2404 = vld [vmem:[%s12 + $0xa8] sm:$0xff]
        %v2405 = vld [vmem:[%s12 + $0xb0] sm:$0xff]
        %v2406 = vld [vmem:[%s12 + $0xb8] sm:$0xff]
        %v2407 = vld [vmem:[%s12 + $0xc0] sm:$0xff]
        %v2408 = vld [vmem:[%s12 + $0xc8] sm:$0xff]
        %v2409 = vld [vmem:[%s12 + $0xd0] sm:$0xff]
        %v2410 = vld [vmem:[%s12 + $0xd8] sm:$0xff]
        %v2411 = vld [vmem:[%s12 + $0xe0] sm:$0xff]
        %v2412 = vld [vmem:[%s12 + $0xe8] sm:$0xff]
        %v2413 = vld [vmem:[%s12 + $0xf0] sm:$0xff]
        %v2414 = vld [vmem:[%s12 + $0xf8] sm:$0xff]
        %v2415 = vld [vmem:[%s12 + $0x100] sm:$0xff]
        %v2416 = vld [vmem:[%s12 + $0x108] sm:$0xff]
        %v2417 = vld [vmem:[%s12 + $0x110] sm:$0xff]
        %v2418 = vld [vmem:[%s12 + $0x118] sm:$0xff]
        %v2419 = vld [vmem:[%s12 + $0x120] sm:$0xff]
        %v2420 = vld [vmem:[%s12 + $0x128] sm:$0xff]
        %v2421 = vld [vmem:[%s12 + $0x130] sm:$0xff]
        %v2422 = vld [vmem:[%s12 + $0x138] sm:$0xff]
        %v2423 = vld [vmem:[%s12 + $0x140] sm:$0xff]
        %v2424 = vld [vmem:[%s12 + $0x148] sm:$0xff]
        %v2425 = vld [vmem:[%s12 + $0x150] sm:$0xff]
        %v2426 = vld [vmem:[%s12 + $0x158] sm:$0xff]
        %v2427 = vld [vmem:[%s12 + $0x160] sm:$0xff]
        %v2428 = vld [vmem:[%s12 + $0x168] sm:$0xff]
        %v2429 = vld [vmem:[%s12 + $0x170] sm:$0xff]
        %v2430 = vld [vmem:[%s12 + $0x178] sm:$0xff]
        %v2431 = vld [vmem:[%s13] sm:$0x1]
        %v2433 = vlaneseq
        %v2434 = vshrl.u32 %v2433, 7
        %v2435 = vsub.s32 0, %v2434
        %v2436 = vrot.slane %v2431, %v2435
        %2438 = vmatprep.subr.mxu0 0.0
        %2439 = vmatpush1.msra.mxu0 %v2398
        %2440 = vmatprep.subr.mxu0 0.0
        %2441 = vmatpush1.msra.mxu0 %v2397
        %2442 = vmatprep.subr.mxu0 0.0
        %2443 = vmatpush1.msra.mxu0 %v2396
        %2444 = vmatprep.subr.mxu0 0.0
        %2445 = vmatpush1.msra.mxu0 %v2395
        %2446 = vmatprep.subr.mxu0 0.0
        %2447 = vmatpush1.msra.mxu0 %v2394
        %2448 = vmatprep.subr.mxu0 0.0
        %2449 = vmatpush1.msra.mxu0 %v2393
        %2450 = vmatprep.subr.mxu0 0.0
        %2451 = vmatpush1.msra.mxu0 %v2392
        %2452 = vmatprep.subr.mxu0 0.0
        %2453 = vmatpush1.msra.mxu0 %v2391
        %2454 = vmatprep.subr.mxu0 0.0
        %2455 = vmatpush1.msra.mxu0 %v2390
        %2456 = vmatprep.subr.mxu0 0.0
        %2457 = vmatpush1.msra.mxu0 %v2389
        %2458 = vmatprep.subr.mxu0 0.0
        %2459 = vmatpush1.msra.mxu0 %v2388
        %2460 = vmatprep.subr.mxu0 0.0
        %2461 = vmatpush1.msra.mxu0 %v2387
        %2462 = vmatprep.subr.mxu0 0.0
        %2463 = vmatpush1.msra.mxu0 %v2386
        %2464 = vmatprep.subr.mxu0 0.0
        %2465 = vmatpush1.msra.mxu0 %v2385
        %2466 = vmatprep.subr.mxu0 0.0
        %2467 = vmatpush1.msra.mxu0 %v2384
        %2468 = vmatprep.subr.mxu0 0.0
        %2469 = vmatpush1.msra.mxu0 %v2383
        %2470 = vmatprep.subr.mxu0 0.0
        %2471 = vmatpush2.msra.mxu0 %v2414
        %2472 = vmatprep.subr.mxu0 0.0
        %2473 = vmatpush2.msra.mxu0 %v2413
        %2474 = vmatprep.subr.mxu0 0.0
        %2475 = vmatpush2.msra.mxu0 %v2412
        %2476 = vmatprep.subr.mxu0 0.0
        %2477 = vmatpush2.msra.mxu0 %v2411
        %2478 = vmatprep.subr.mxu0 0.0
        %2479 = vmatpush2.msra.mxu0 %v2410
        %2480 = vmatprep.subr.mxu0 0.0
        %2481 = vmatpush2.msra.mxu0 %v2409
        %2482 = vmatprep.subr.mxu0 0.0
        %2483 = vmatpush2.msra.mxu0 %v2408
        %2484 = vmatprep.subr.mxu0 0.0
        %2485 = vmatpush2.msra.mxu0 %v2407
        %2486 = vmatprep.subr.mxu0 0.0
        %2487 = vmatpush2.msra.mxu0 %v2406
        %2488 = vmatprep.subr.mxu0 0.0
        %2489 = vmatpush2.msra.mxu0 %v2405
        %2490 = vmatprep.subr.mxu0 0.0
        %2491 = vmatpush2.msra.mxu0 %v2404
        %2492 = vmatprep.subr.mxu0 0.0
        %2493 = vmatpush2.msra.mxu0 %v2403
        %2494 = vmatprep.subr.mxu0 0.0
        %2495 = vmatpush2.msra.mxu0 %v2402
        %2496 = vmatprep.subr.mxu0 0.0
        %2497 = vmatpush2.msra.mxu0 %v2401
        %2498 = vmatprep.subr.mxu0 0.0
        %2499 = vmatpush2.msra.mxu0 %v2400
        %2500 = vmatprep.subr.mxu0 0.0
        %2501 = vmatpush2.msra.mxu0 %v2399
        %2502 = vmatprep.mubr.f32.mxu0 %v2381
        %2503 = vmatmul.mubr.f32.gmra.mxu0 %v2380
        %v2504 = vpop.f32.mrf.mxu0
        %v2505 = vadd.f32 %v2436, %v2504
        %v2506 = vpop.f32.mrf.mxu0
        %2507 = vdwg.mxu0
        %2508 = vmatprep.subr.mxu0 0.0
        %2509 = vmatpush1.msra.mxu0 %v2430
        %2510 = vmatprep.subr.mxu0 0.0
        %2511 = vmatpush1.msra.mxu0 %v2429
        %2512 = vmatprep.subr.mxu0 0.0
        %2513 = vmatpush1.msra.mxu0 %v2428
        %2514 = vmatprep.subr.mxu0 0.0
        %2515 = vmatpush1.msra.mxu0 %v2427
        %2516 = vmatprep.subr.mxu0 0.0
        %2517 = vmatpush1.msra.mxu0 %v2426
        %2518 = vmatprep.subr.mxu0 0.0
        %2519 = vmatpush1.msra.mxu0 %v2425
        %2520 = vmatprep.subr.mxu0 0.0
        %2521 = vmatpush1.msra.mxu0 %v2424
        %2522 = vmatprep.subr.mxu0 0.0
        %2523 = vmatpush1.msra.mxu0 %v2423
        %2524 = vmatprep.subr.mxu0 0.0
        %2525 = vmatpush1.msra.mxu0 %v2422
        %2526 = vmatprep.subr.mxu0 0.0
        %2527 = vmatpush1.msra.mxu0 %v2421
        %2528 = vmatprep.subr.mxu0 0.0
        %2529 = vmatpush1.msra.mxu0 %v2420
        %2530 = vmatprep.subr.mxu0 0.0
        %2531 = vmatpush1.msra.mxu0 %v2419
        %2532 = vmatprep.subr.mxu0 0.0
        %2533 = vmatpush1.msra.mxu0 %v2418
        %2534 = vmatprep.subr.mxu0 0.0
        %2535 = vmatpush1.msra.mxu0 %v2417
        %2536 = vmatprep.subr.mxu0 0.0
        %2537 = vmatpush1.msra.mxu0 %v2416
        %2538 = vmatprep.subr.mxu0 0.0
        %2539 = vmatpush1.msra.mxu0 %v2415
        %2540 = vmatprep.subr.mxu0 0.0
        %2541 = vmatpush2.msra.mxu0 0.0
        %2542 = vmatprep.subr.mxu0 0.0
        %2543 = vmatpush2.msra.mxu0 0.0
        %2544 = vmatprep.subr.mxu0 0.0
        %2545 = vmatpush2.msra.mxu0 0.0
        %2546 = vmatprep.subr.mxu0 0.0
        %2547 = vmatpush2.msra.mxu0 0.0
        %2548 = vmatprep.subr.mxu0 0.0
        %2549 = vmatpush2.msra.mxu0 0.0
        %2550 = vmatprep.subr.mxu0 0.0
        %2551 = vmatpush2.msra.mxu0 0.0
        %2552 = vmatprep.subr.mxu0 0.0
        %2553 = vmatpush2.msra.mxu0 0.0
        %2554 = vmatprep.subr.mxu0 0.0
        %2555 = vmatpush2.msra.mxu0 0.0
        %2556 = vmatprep.subr.mxu0 0.0
        %2557 = vmatpush2.msra.mxu0 0.0
        %2558 = vmatprep.subr.mxu0 0.0
        %2559 = vmatpush2.msra.mxu0 0.0
        %2560 = vmatprep.subr.mxu0 0.0
        %2561 = vmatpush2.msra.mxu0 0.0
        %2562 = vmatprep.subr.mxu0 0.0
        %2563 = vmatpush2.msra.mxu0 0.0
        %2564 = vmatprep.subr.mxu0 0.0
        %2565 = vmatpush2.msra.mxu0 0.0
        %2566 = vmatprep.subr.mxu0 0.0
        %2567 = vmatpush2.msra.mxu0 0.0
        %2568 = vmatprep.subr.mxu0 0.0
        %2569 = vmatpush2.msra.mxu0 0.0
        %2570 = vmatprep.subr.mxu0 0.0
        %2571 = vmatpush2.msra.mxu0 0.0
        %2572 = vmatprep.mubr.f32.mxu0 0.0
        %2573 = vmatmul.mubr.f32.gmra.mxu0 %v2382
        %v2574 = vpop.f32.mrf.mxu0
        %v2575 = vadd.f32 %v2505, %v2574
        %v2576 = vpop.f32.mrf.mxu0
        %2577 = vdwg.mxu0
        %2578 = vst [vmem:[%s571] sm:$0xff] %v2575
        %s2579 = sand.u32 %s355, 1
        %s2580 = scalar_lea.sflag [#allocation5], %s2579
        %s2581 = sand.u32 %s355, 1
        %s2582 = smul.addr %s2581, 8
        %s2583 = scalar_lea.vmem [#allocation11], %s2582
        // Predicated region
        $region93: #{tpu_custom_call.1} parent=75 // pred_check
          %p2584 = pneg %p365
        $region94: #{tpu_custom_call.1} parent=75 // pred_check_branch
          %2586 = sbr.rel (%p2584) target = $region96
        $region95: #{tpu_custom_call.1} parent=75 // pred_region
          %s2588 = ssub.s32 128, 128
          %2589 = vsyncadd %s2580, %s2588
          %s2590 = smul.addr %s33, 128
          %s2591 = scalar_lea.hbm %s14, %s2590
          %s2593 = sshll.u32 %s2583, 4
          %s2594 = int_to_ptr.vmem [resolvable:$true] %s2593
          %2596 = dma.vmem_to_hbm [thread:$0]  %s2594, 128, %s2591, %s2580
        $region96: #{tpu_custom_call.1} parent=75 // pred_fallthru
          _
      $region76: #{tpu_custom_call.1} parent=5 // pred_fallthru
        _
      %p2597 = scmp.le.s32.totalorder 2, %s28
      // Predicated region
      $region97: #{tpu_custom_call.1} parent=5 // pred_check
        %p2598 = pneg %p2597
      $region98: #{tpu_custom_call.1} parent=5 // pred_check_branch
        %2600 = sbr.rel (%p2598) target = $region100
      $region99: #{tpu_custom_call.1} parent=5 // pred_region
        %s2601 = ssub.s32 %s28, 2
        // Predicated region
        $region101: #{tpu_custom_call.1} parent=99 // pred_check
          %p2602 = pneg %p371
        $region102: #{tpu_custom_call.1} parent=99 // pred_check_branch
          %2604 = sbr.rel (%p2602) target = $region104
        $region103: #{tpu_custom_call.1} parent=99 // pred_region
          %s2605 = sand.u32 %s356, 1
          %s2606 = scalar_lea.sflag [#allocation5], %s2605
          %s2607 = sand.u32 %s356, 1
          %s2608 = smul.addr %s2607, 8
          %s2609 = scalar_lea.vmem [#allocation11], %s2608
          %2610 = dma.done %s2606, 128
        $region104: #{tpu_custom_call.1} parent=99 // pred_fallthru
          _
      $region100: #{tpu_custom_call.1} parent=5 // pred_fallthru
        _
    $region6: #{tpu_custom_call.1} parent=1 // loop_footer
      %s32 = sadd.s32 1, %s28
    $region7: #{tpu_custom_call.1} parent=1 // loop_footer_branch
      %27 = sbr.rel target = $region3
    $region8: #{tpu_custom_call.1} parent=1 // loop_exit
      _
    %2611 = vsyncpa [#allocation4], 1
    %s2612 = scalar_lea.sflag [#allocation4], 1
    %2613 = vsyncpa %s2612, 1
    %2614 = vsyncpa [#allocation9], 1
    %2615 = vsyncpa [#allocation5], 1
    %s2616 = scalar_lea.sflag [#allocation5], 1
    %2617 = vsyncpa %s2616, 1
    %2618 = vsyncpa [#allocation6], 1
    %s2619 = scalar_lea.sflag [#allocation6], 1
    %2620 = vsyncpa %s2619, 1

</llo_original>
